<compile_context>
chip_gen: v7x
topology: tpu7x:2x2x1
jax: 0.10.0
libtpu: 0.0.40
codegen_flags: <defaults>
</compile_context>

<pallas_src>
import functools

import jax
import jax.numpy as jnp
import numpy as np
from jax.experimental import pallas as pl
from jax.experimental.pallas import tpu as pltpu


def _attention_kernel(xq_ref, xkv_ref, wq_ref, bq_ref, wkv_ref, bkv_ref,
                      wp_ref, bp_ref, o_ref, *, heads, compute_dtype):
    cd = compute_dtype
    tile_s = xq_ref.shape[0]                  # query rows in this grid step
    s_full = xkv_ref.shape[0]                 # full sequence length (keys/values)
    f = wq_ref.shape[1]
    hd = f // heads

    xq = xq_ref[...]                          # (T, d)  query tile
    xkv = xkv_ref[...]                        # (S, d)  full sequence (resident)

    # Q projection from the query tile; fused K+V projection (one MXU pass over
    # a lane-dense (d, 2f) weight) from the full sequence.
    q = (jnp.dot(xq.astype(cd), wq_ref[...].astype(cd),
                 preferred_element_type=jnp.float32) + bq_ref[...])         # (T, f)
    kv = (jnp.dot(xkv.astype(cd), wkv_ref[...].astype(cd),
                  preferred_element_type=jnp.float32) + bkv_ref[...])       # (S, 2f)
    k = kv[:, :f]
    v = kv[:, f:]

    # Head-batched layout: one batched dot_general per stage instead of
    # `heads` narrow lane-sliced matmuls; K transpose folded into contraction.
    qh = jnp.transpose(q.reshape(tile_s, heads, hd), (1, 0, 2)).astype(cd)  # (H, T, hd)
    kh = jnp.transpose(k.reshape(s_full, heads, hd), (1, 0, 2)).astype(cd)  # (H, S, hd)
    vh = jnp.transpose(v.reshape(s_full, heads, hd), (1, 0, 2)).astype(cd)  # (H, S, hd)

    scores = jnp.einsum("htd,hsd->hts", qh, kh,
                        preferred_element_type=jnp.float32)                 # (H, T, S)

    # torch.triu_indices(heads, S, offset=1) indexing dims (1, 2) of the
    # (H, S, S) scores: mask (i, j) iff i < heads and j > i, for every head.
    # Row indices are global (tile offset added).  Cheap VPU work, computed
    # unconditionally (only the first tile is ever affected when T >= heads).
    row0 = pl.program_id(0) * tile_s
    row = jax.lax.broadcasted_iota(jnp.int32, (tile_s, s_full), 0) + row0
    col = jax.lax.broadcasted_iota(jnp.int32, (tile_s, s_full), 1)
    mask = jnp.where((row < heads) & (col > row),
                     jnp.float32(-1000000000.0), jnp.float32(0.0))
    scores = scores + mask[None, :, :]

    # Numerically-stable softmax over the key axis; reciprocal -> EUP slot.
    scores = scores - jnp.max(scores, axis=-1, keepdims=True)
    e = jnp.exp(scores)
    p = e * pl.reciprocal(jnp.sum(e, axis=-1, keepdims=True), approx=False)

    ctx = jnp.einsum("hts,hsd->htd", p.astype(cd), vh,
                     preferred_element_type=jnp.float32)                    # (H, T, hd)

    # Output projection fused with the head concatenation: accumulate
    # ctx[h] @ wp[h*hd:(h+1)*hd, :] (sublane slices of wp are cheap) instead
    # of concatenating heads along lanes and doing one big dot.
    acc = jnp.zeros((tile_s, f), jnp.float32)
    for h in range(heads):                                    # static unroll (heads is small)
        acc = acc + jnp.dot(ctx[h].astype(cd),
                            wp_ref[h * hd:(h + 1) * hd, :].astype(cd),
                            preferred_element_type=jnp.float32)
    o_ref[...] = acc + bp_ref[...]


def pack_params(params):
    """One-time host-side packing: pre-transpose Linear weights to (in, out),
    fuse the K and V weights/biases, reshape biases to (1, out).  Done once so
    no transposes/concats sit on the per-call hot path."""
    f, d = params["wq"].shape
    return {
        "wq": jnp.asarray(params["wq"]).T,                                   # (d, f)
        "bq": jnp.asarray(params["bq"]).reshape(1, f),
        "wkv": jnp.concatenate([jnp.asarray(params["wk"]).T,
                                jnp.asarray(params["wv"]).T], axis=1),       # (d, 2f)
        "bkv": jnp.concatenate([jnp.asarray(params["bk"]),
                                jnp.asarray(params["bv"])]).reshape(1, 2 * f),
        "wp": jnp.asarray(params["wp"]).T,                                   # (f, f); rows = concat dim
        "bp": jnp.asarray(params["bp"]).reshape(1, f),
    }


def attention_forward(x, packed, heads, *, tile_s=128,
                      compute_dtype=jnp.float32):
    s_len, d = x.shape
    f = packed["wq"].shape[1]
    assert f % heads == 0, "f must be divisible by heads"

    tile_s = min(tile_s, s_len)
    assert s_len % tile_s == 0, "sequence length must be a multiple of tile_s"
    grid = (s_len // tile_s,)

    resident = lambda *_: (0, 0)       # weights / biases / full x: stay in VMEM
    tiled = lambda i: (i, 0)           # query tile / output tile

    kernel = functools.partial(_attention_kernel, heads=heads,
                               compute_dtype=compute_dtype)
    return pl.pallas_call(
        kernel,
        out_shape=jax.ShapeDtypeStruct((s_len, f), jnp.float32),
        grid=grid,
        in_specs=[
            pl.BlockSpec((tile_s, d), tiled),        # x  (query tile)
            pl.BlockSpec((s_len, d), resident),      # x  (full, for K/V)
            pl.BlockSpec((d, f), resident),          # wq
            pl.BlockSpec((1, f), resident),          # bq
            pl.BlockSpec((d, 2 * f), resident),      # wkv (fused K|V)
            pl.BlockSpec((1, 2 * f), resident),      # bkv
            pl.BlockSpec((f, f), resident),          # wp (pre-transposed)
            pl.BlockSpec((1, f), resident),          # bp
        ],
        out_specs=pl.BlockSpec((tile_s, f), tiled),
        compiler_params=pltpu.CompilerParams(
            dimension_semantics=("parallel",)),      # v7x: shard tiles across 2 TCs
    )(x, x, packed["wq"], packed["bq"], packed["wkv"], packed["bkv"],
      packed["wp"], packed["bp"])


def _reference(x, params, heads):
    """Pure-JAX mirror of the PyTorch forward (for verification)."""
    q = x @ params["wq"].T + params["bq"]
    k = x @ params["wk"].T + params["bk"]
    v = x @ params["wv"].T + params["bv"]
    s_len, f = q.shape
    hd = f // heads
    qh = q.reshape(s_len, heads, hd).transpose(1, 0, 2)        # (H, S, hd)
    kh = k.reshape(s_len, heads, hd).transpose(1, 0, 2)
    vh = v.reshape(s_len, heads, hd).transpose(1, 0, 2)
    scores = jnp.einsum("hsd,htd->hst", qh, kh)                # (H, S, S)
    row = jnp.arange(s_len)[:, None]
    col = jnp.arange(s_len)[None, :]
    mask = jnp.where((row < heads) & (col > row), -1000000000.0, 0.0)
    scores = scores + mask[None, :, :]
    p = jax.nn.softmax(scores, axis=2)
    out = jnp.einsum("hst,htd->hsd", p, vh)                    # (H, S, hd)
    cat = out.transpose(1, 0, 2).reshape(s_len, heads * hd)    # (S, f)
    return cat @ params["wp"].T + params["bp"]


def _init_params(key, d, f):
    ks = jax.random.split(key, 8)
    scale = 0.1
    return {
        "wq": scale * jax.random.normal(ks[0], (f, d), jnp.float32),
        "bq": scale * jax.random.normal(ks[1], (f,), jnp.float32),
        "wk": scale * jax.random.normal(ks[2], (f, d), jnp.float32),
        "bk": scale * jax.random.normal(ks[3], (f,), jnp.float32),
        "wv": scale * jax.random.normal(ks[4], (f, d), jnp.float32),
        "bv": scale * jax.random.normal(ks[5], (f,), jnp.float32),
        "wp": scale * jax.random.normal(ks[6], (f, f), jnp.float32),
        "bp": scale * jax.random.normal(ks[7], (f,), jnp.float32),
    }


if __name__ == "__main__":
    S, D, F, HEADS = 8, 32, 32, 4

    key = jax.random.PRNGKey(0)
    kx, kp = jax.random.split(key)
    x = jax.random.normal(kx, (S, D), jnp.float32)
    params = _init_params(kp, D, F)
    packed = pack_params(params)     # one-time weight packing (no per-call .T)

    out = attention_forward(x, packed, HEADS, tile_s=8)
    out = jax.block_until_ready(out)

    ref = jax.block_until_ready(_reference(x, params, HEADS))
    np.testing.assert_allclose(np.asarray(out), np.asarray(ref),
                               rtol=1e-5, atol=1e-5)
    print("KERNEL_OK")
</pallas_src>

<mosaic_0001>
module attributes {stable_mosaic.version = 11 : i64} {
  func.func @_attention_kernel(%arg0: i32, %arg1: memref<8x32xf32, #tpu.memory_space<vmem>>, %arg2: memref<8x32xf32, #tpu.memory_space<vmem>>, %arg3: memref<32x32xf32, #tpu.memory_space<vmem>>, %arg4: memref<1x32xf32, #tpu.memory_space<vmem>>, %arg5: memref<32x64xf32, #tpu.memory_space<vmem>>, %arg6: memref<1x64xf32, #tpu.memory_space<vmem>>, %arg7: memref<32x32xf32, #tpu.memory_space<vmem>>, %arg8: memref<1x32xf32, #tpu.memory_space<vmem>>, %arg9: memref<8x32xf32, #tpu.memory_space<vmem>>) attributes {dimension_semantics = [#tpu.dimension_semantics<parallel>], iteration_bounds = array<i64: 1>, scalar_prefetch = 0 : i64, scratch_operands = 0 : i64, tpu.core_type = #tpu.core_type<tc>, window_params = [{transform_indices = @transform_0, window_bounds = array<i64: 8, 32>}, {pipeline_mode = #tpu.pipeline_mode<synchronous>, transform_indices = @transform_1, window_bounds = array<i64: 8, 32>}, {pipeline_mode = #tpu.pipeline_mode<synchronous>, transform_indices = @transform_2, window_bounds = array<i64: 32, 32>}, {pipeline_mode = #tpu.pipeline_mode<synchronous>, transform_indices = @transform_3, window_bounds = array<i64: 1, 32>}, {pipeline_mode = #tpu.pipeline_mode<synchronous>, transform_indices = @transform_4, window_bounds = array<i64: 32, 64>}, {pipeline_mode = #tpu.pipeline_mode<synchronous>, transform_indices = @transform_5, window_bounds = array<i64: 1, 64>}, {pipeline_mode = #tpu.pipeline_mode<synchronous>, transform_indices = @transform_6, window_bounds = array<i64: 32, 32>}, {pipeline_mode = #tpu.pipeline_mode<synchronous>, transform_indices = @transform_7, window_bounds = array<i64: 1, 32>}, {transform_indices = @transform_8, window_bounds = array<i64: 8, 32>}]} {
    %c0 = arith.constant 0 : index
    %c0_0 = arith.constant 0 : index
    %0 = vector.load %arg1[%c0, %c0_0] : memref<8x32xf32, #tpu.memory_space<vmem>>, vector<8x32xf32>
    %c0_1 = arith.constant 0 : index
    %c0_2 = arith.constant 0 : index
    %1 = vector.load %arg2[%c0_1, %c0_2] : memref<8x32xf32, #tpu.memory_space<vmem>>, vector<8x32xf32>
    %c0_3 = arith.constant 0 : index
    %c0_4 = arith.constant 0 : index
    %2 = vector.load %arg3[%c0_3, %c0_4] : memref<32x32xf32, #tpu.memory_space<vmem>>, vector<32x32xf32>
    %cst = arith.constant dense<0.000000e+00> : vector<8x32xf32>
    %3 = tpu.matmul %0, %2, %cst {dimension_numbers = #tpu.dot_dimension_numbers<[1], [0], [0], [1], [0, 0, 1, 1], [], []>} : vector<8x32xf32>, vector<32x32xf32>, vector<8x32xf32> -> vector<8x32xf32>
    %c0_5 = arith.constant 0 : index
    %c0_6 = arith.constant 0 : index
    %4 = vector.load %arg4[%c0_5, %c0_6] : memref<1x32xf32, #tpu.memory_space<vmem>>, vector<1x32xf32>
    %5 = vector.broadcast %4 : vector<1x32xf32> to vector<8x32xf32>
    %6 = arith.addf %3, %5 : vector<8x32xf32>
    %c0_7 = arith.constant 0 : index
    %c0_8 = arith.constant 0 : index
    %7 = vector.load %arg5[%c0_7, %c0_8] : memref<32x64xf32, #tpu.memory_space<vmem>>, vector<32x64xf32>
    %cst_9 = arith.constant dense<0.000000e+00> : vector<8x64xf32>
    %8 = tpu.matmul %1, %7, %cst_9 {dimension_numbers = #tpu.dot_dimension_numbers<[1], [0], [0], [1], [0, 0, 1, 1], [], []>} : vector<8x32xf32>, vector<32x64xf32>, vector<8x64xf32> -> vector<8x64xf32>
    %c0_10 = arith.constant 0 : index
    %c0_11 = arith.constant 0 : index
    %9 = vector.load %arg6[%c0_10, %c0_11] : memref<1x64xf32, #tpu.memory_space<vmem>>, vector<1x64xf32>
    %10 = vector.broadcast %9 : vector<1x64xf32> to vector<8x64xf32>
    %11 = arith.addf %8, %10 : vector<8x64xf32>
    %12 = vector.extract_strided_slice %11 {offsets = [0, 0], sizes = [8, 32], strides = [1, 1]} : vector<8x64xf32> to vector<8x32xf32>
    %13 = vector.extract_strided_slice %11 {offsets = [0, 32], sizes = [8, 32], strides = [1, 1]} : vector<8x64xf32> to vector<8x32xf32>
    %14 = vector.shape_cast %6 : vector<8x32xf32> to vector<8x4x8xf32>
    %15 = tpu.transpose %14, [1, 0, 2] : vector<8x4x8xf32> -> vector<4x8x8xf32>
    %16 = vector.shape_cast %12 : vector<8x32xf32> to vector<8x4x8xf32>
    %17 = tpu.transpose %16, [1, 0, 2] : vector<8x4x8xf32> -> vector<4x8x8xf32>
    %18 = vector.shape_cast %13 : vector<8x32xf32> to vector<8x4x8xf32>
    %19 = tpu.transpose %18, [1, 0, 2] : vector<8x4x8xf32> -> vector<4x8x8xf32>
    "tpu.trace_start"() <{level = 10 : i32, message = "htd,hsd->hts"}> : () -> ()
    %cst_12 = arith.constant dense<0.000000e+00> : vector<4x8x8xf32>
    %20 = tpu.matmul %15, %17, %cst_12 {dimension_numbers = #tpu.dot_dimension_numbers<[2], [2], [1], [1], [0, 0, 0, 1, 1, 1], [0], [0]>} : vector<4x8x8xf32>, vector<4x8x8xf32>, vector<4x8x8xf32> -> vector<4x8x8xf32>
    "tpu.trace_stop"() : () -> ()
    %c8_i32 = arith.constant 8 : i32
    %21 = arith.muli %arg0, %c8_i32 : i32
    %22 = tpu.iota {dimensions = array<i32: 0>} : vector<8x8xi32>
    %23 = vector.broadcast %21 : i32 to vector<8x8xi32>
    %24 = arith.addi %22, %23 : vector<8x8xi32>
    %25 = tpu.iota {dimensions = array<i32: 1>} : vector<8x8xi32>
    %c4_i32 = arith.constant 4 : i32
    %26 = vector.broadcast %c4_i32 : i32 to vector<8x8xi32>
    %27 = arith.cmpi slt, %24, %26 : vector<8x8xi32>
    %28 = arith.cmpi sgt, %25, %24 : vector<8x8xi32>
    %29 = arith.andi %27, %28 : vector<8x8xi1>
    %cst_13 = arith.constant -1.000000e+09 : f32
    %cst_14 = arith.constant 0.000000e+00 : f32
    %30 = vector.broadcast %cst_13 : f32 to vector<8x8xf32>
    %31 = vector.broadcast %cst_14 : f32 to vector<8x8xf32>
    %32 = arith.select %29, %30, %31 : vector<8x8xi1>, vector<8x8xf32>
    %33 = vector.shape_cast %32 : vector<8x8xf32> to vector<1x8x8xf32>
    %34 = vector.broadcast %33 : vector<1x8x8xf32> to vector<4x8x8xf32>
    %35 = arith.addf %20, %34 : vector<4x8x8xf32>
    %cst_15 = arith.constant dense<0xFF800000> : vector<4x8xf32>
    %36 = vector.multi_reduction <maximumf>, %35, %cst_15 [2] : vector<4x8x8xf32> to vector<4x8xf32>
    %37 = vector.shape_cast %36 : vector<4x8xf32> to vector<4x8x1xf32>
    %38 = vector.broadcast %37 : vector<4x8x1xf32> to vector<4x8x8xf32>
    %39 = arith.subf %35, %38 : vector<4x8x8xf32>
    %40 = math.exp %39 : vector<4x8x8xf32>
    %cst_16 = arith.constant dense<0.000000e+00> : vector<4x8xf32>
    %41 = vector.multi_reduction <add>, %40, %cst_16 [2] : vector<4x8x8xf32> to vector<4x8xf32>
    %42 = vector.shape_cast %41 : vector<4x8xf32> to vector<4x8x1xf32>
    %43 = tpu.reciprocal %42 : vector<4x8x1xf32> -> vector<4x8x1xf32>
    %44 = vector.broadcast %43 : vector<4x8x1xf32> to vector<4x8x8xf32>
    %45 = arith.mulf %40, %44 : vector<4x8x8xf32>
    "tpu.trace_start"() <{level = 10 : i32, message = "hts,hsd->htd"}> : () -> ()
    %cst_17 = arith.constant dense<0.000000e+00> : vector<4x8x8xf32>
    %46 = tpu.matmul %45, %19, %cst_17 {dimension_numbers = #tpu.dot_dimension_numbers<[2], [1], [1], [2], [0, 0, 0, 1, 1, 2], [0], [0]>} : vector<4x8x8xf32>, vector<4x8x8xf32>, vector<4x8x8xf32> -> vector<4x8x8xf32>
    %cst_18 = arith.constant 0.000000e+00 : f32
    "tpu.trace_stop"() : () -> ()
    %47 = vector.broadcast %cst_18 : f32 to vector<8x32xf32>
    %48 = vector.extract_strided_slice %46 {offsets = [0, 0, 0], sizes = [1, 8, 8], strides = [1, 1, 1]} : vector<4x8x8xf32> to vector<1x8x8xf32>
    %49 = vector.shape_cast %48 : vector<1x8x8xf32> to vector<8x8xf32>
    %c0_19 = arith.constant 0 : index
    %c0_20 = arith.constant 0 : index
    %50 = vector.load %arg7[%c0_19, %c0_20] : memref<32x32xf32, #tpu.memory_space<vmem>>, vector<8x32xf32>
    %cst_21 = arith.constant dense<0.000000e+00> : vector<8x32xf32>
    %51 = tpu.matmul %49, %50, %cst_21 {dimension_numbers = #tpu.dot_dimension_numbers<[1], [0], [0], [1], [0, 0, 1, 1], [], []>} : vector<8x8xf32>, vector<8x32xf32>, vector<8x32xf32> -> vector<8x32xf32>
    %52 = arith.addf %47, %51 : vector<8x32xf32>
    %53 = vector.extract_strided_slice %46 {offsets = [1, 0, 0], sizes = [1, 8, 8], strides = [1, 1, 1]} : vector<4x8x8xf32> to vector<1x8x8xf32>
    %54 = vector.shape_cast %53 : vector<1x8x8xf32> to vector<8x8xf32>
    %c8 = arith.constant 8 : index
    %c0_22 = arith.constant 0 : index
    %55 = vector.load %arg7[%c8, %c0_22] : memref<32x32xf32, #tpu.memory_space<vmem>>, vector<8x32xf32>
    %cst_23 = arith.constant dense<0.000000e+00> : vector<8x32xf32>
    %56 = tpu.matmul %54, %55, %cst_23 {dimension_numbers = #tpu.dot_dimension_numbers<[1], [0], [0], [1], [0, 0, 1, 1], [], []>} : vector<8x8xf32>, vector<8x32xf32>, vector<8x32xf32> -> vector<8x32xf32>
    %57 = arith.addf %52, %56 : vector<8x32xf32>
    %58 = vector.extract_strided_slice %46 {offsets = [2, 0, 0], sizes = [1, 8, 8], strides = [1, 1, 1]} : vector<4x8x8xf32> to vector<1x8x8xf32>
    %59 = vector.shape_cast %58 : vector<1x8x8xf32> to vector<8x8xf32>
    %c16 = arith.constant 16 : index
    %c0_24 = arith.constant 0 : index
    %60 = vector.load %arg7[%c16, %c0_24] : memref<32x32xf32, #tpu.memory_space<vmem>>, vector<8x32xf32>
    %cst_25 = arith.constant dense<0.000000e+00> : vector<8x32xf32>
    %61 = tpu.matmul %59, %60, %cst_25 {dimension_numbers = #tpu.dot_dimension_numbers<[1], [0], [0], [1], [0, 0, 1, 1], [], []>} : vector<8x8xf32>, vector<8x32xf32>, vector<8x32xf32> -> vector<8x32xf32>
    %62 = arith.addf %57, %61 : vector<8x32xf32>
    %63 = vector.extract_strided_slice %46 {offsets = [3, 0, 0], sizes = [1, 8, 8], strides = [1, 1, 1]} : vector<4x8x8xf32> to vector<1x8x8xf32>
    %64 = vector.shape_cast %63 : vector<1x8x8xf32> to vector<8x8xf32>
    %c24 = arith.constant 24 : index
    %c0_26 = arith.constant 0 : index
    %65 = vector.load %arg7[%c24, %c0_26] : memref<32x32xf32, #tpu.memory_space<vmem>>, vector<8x32xf32>
    %cst_27 = arith.constant dense<0.000000e+00> : vector<8x32xf32>
    %66 = tpu.matmul %64, %65, %cst_27 {dimension_numbers = #tpu.dot_dimension_numbers<[1], [0], [0], [1], [0, 0, 1, 1], [], []>} : vector<8x8xf32>, vector<8x32xf32>, vector<8x32xf32> -> vector<8x32xf32>
    %67 = arith.addf %62, %66 : vector<8x32xf32>
    %c0_28 = arith.constant 0 : index
    %c0_29 = arith.constant 0 : index
    %68 = vector.load %arg8[%c0_28, %c0_29] : memref<1x32xf32, #tpu.memory_space<vmem>>, vector<1x32xf32>
    %69 = vector.broadcast %68 : vector<1x32xf32> to vector<8x32xf32>
    %70 = arith.addf %67, %69 : vector<8x32xf32>
    %c0_30 = arith.constant 0 : index
    %c0_31 = arith.constant 0 : index
    %71 = vector.load %arg9[%c0_30, %c0_31] : memref<8x32xf32, #tpu.memory_space<vmem>>, vector<8x32xf32>
    tpu.vector_store %arg9[%c0_30, %c0_31], %70 {strides = array<i32>} : memref<8x32xf32, #tpu.memory_space<vmem>>, vector<8x32xf32>,
    return
  }
  func.func @transform_0(%arg0: i32) -> (i32, i32) {
    %c0_i32 = arith.constant 0 : i32
    %c0_i32_0 = arith.constant 0 : i32
    return %arg0, %c0_i32 : i32, i32
  }
  func.func @transform_1(%arg0: i32) -> (i32, i32) {
    %c0_i32 = arith.constant 0 : i32
    %c0_i32_0 = arith.constant 0 : i32
    %c0_i32_1 = arith.constant 0 : i32
    return %c0_i32, %c0_i32_0 : i32, i32
  }
  func.func @transform_2(%arg0: i32) -> (i32, i32) {
    %c0_i32 = arith.constant 0 : i32
    %c0_i32_0 = arith.constant 0 : i32
    %c0_i32_1 = arith.constant 0 : i32
    return %c0_i32, %c0_i32_0 : i32, i32
  }
  func.func @transform_3(%arg0: i32) -> (i32, i32) {
    %c0_i32 = arith.constant 0 : i32
    %c0_i32_0 = arith.constant 0 : i32
    %c0_i32_1 = arith.constant 0 : i32
    return %c0_i32, %c0_i32_0 : i32, i32
  }
  func.func @transform_4(%arg0: i32) -> (i32, i32) {
    %c0_i32 = arith.constant 0 : i32
    %c0_i32_0 = arith.constant 0 : i32
    %c0_i32_1 = arith.constant 0 : i32
    return %c0_i32, %c0_i32_0 : i32, i32
  }
  func.func @transform_5(%arg0: i32) -> (i32, i32) {
    %c0_i32 = arith.constant 0 : i32
    %c0_i32_0 = arith.constant 0 : i32
    %c0_i32_1 = arith.constant 0 : i32
    return %c0_i32, %c0_i32_0 : i32, i32
  }
  func.func @transform_6(%arg0: i32) -> (i32, i32) {
    %c0_i32 = arith.constant 0 : i32
    %c0_i32_0 = arith.constant 0 : i32
    %c0_i32_1 = arith.constant 0 : i32
    return %c0_i32, %c0_i32_0 : i32, i32
  }
  func.func @transform_7(%arg0: i32) -> (i32, i32) {
    %c0_i32 = arith.constant 0 : i32
    %c0_i32_0 = arith.constant 0 : i32
    %c0_i32_1 = arith.constant 0 : i32
    return %c0_i32, %c0_i32_0 : i32, i32
  }
  func.func @transform_8(%arg0: i32) -> (i32, i32) {
    %c0_i32 = arith.constant 0 : i32
    %c0_i32_0 = arith.constant 0 : i32
    return %arg0, %c0_i32 : i32, i32
  }
}

</mosaic_0001>

<llo_original>
// kernel: tpu_custom_call.1
$region0: #{tpu_custom_call.1}
  #allocation0 [shape = 'u32[]', space=smem, size = 0x4, offset = 0x4, fixed_abs, tag = 'smem constant byte address 0x4 - core index']
  #allocation1 [shape = 'u32[144,128]{1,0:T(1,128)}', space=vmem, size = 0x12000, scoped, tag = 'internal scratch']
  %s0 = inlined_call_operand.hbm [shape: f32[8,32], index: 0, kind: input, shape index: {}]
  %s1 = inlined_call_operand.hbm [shape: f32[8,32], index: 1, kind: input, shape index: {}]
  %s2 = inlined_call_operand.hbm [shape: f32[32,32], index: 2, kind: input, shape index: {}]
  %s3 = inlined_call_operand.vmem [shape: f32[1,32], index: 3, kind: input, shape index: {}]
  %s4 = inlined_call_operand.hbm [shape: f32[32,64], index: 4, kind: input, shape index: {}]
  %s5 = inlined_call_operand.vmem [shape: f32[1,64], index: 5, kind: input, shape index: {}]
  %s6 = inlined_call_operand.hbm [shape: f32[32,32], index: 6, kind: input, shape index: {}]
  %s7 = inlined_call_operand.vmem [shape: f32[1,32], index: 7, kind: input, shape index: {}]
  %s8 = inlined_call_operand.hbm [shape: f32[8,32], index: 8, kind: output, shape index: {}]
  %s9 = sld [smem:[#allocation0]]
  $region62: #{tpu_custom_call.1} parent=0
    _
  %s11 = ssub.s32 1, %s9
  %s12 = scalar_select 0, %s11, %s9
  $region1: #{tpu_custom_call.1} parent=0
    #allocation2 [shape = 'u8[4096]{0}', space=vmem, size = 0x1000, scoped, tag = 'input window, operand 0, single buffered']
    #allocation3 [shape = 's32[1]{0}', space=sflag, size = 0x4, scoped, tag = 'scoped memory for tpu_custom_call.1']
    #allocation4 [shape = 's32[1]{0}', space=sflag, size = 0x4, scoped, tag = 'scoped memory for tpu_custom_call.1']
    #allocation5 [shape = 'u8[4096]{0}', space=vmem, size = 0x1000, scoped, tag = 'input window, operand 1, single buffered']
    #allocation6 [shape = 's32[1]{0}', space=sflag, size = 0x4, scoped, tag = 'scoped memory for tpu_custom_call.1']
    #allocation7 [shape = 'u8[16384]{0}', space=vmem, size = 0x4000, scoped, tag = 'input window, operand 2, single buffered']
    #allocation8 [shape = 'u8[16384]{0}', space=vmem, size = 0x4000, scoped, tag = 'input window, operand 4, single buffered']
    #allocation9 [shape = 's32[1]{0}', space=sflag, size = 0x4, scoped, tag = 'scoped memory for tpu_custom_call.1']
    #allocation10 [shape = 'u8[16384]{0}', space=vmem, size = 0x4000, scoped, tag = 'input window, operand 6, single buffered']
    #allocation11 [shape = 'u8[4096]{0}', space=vmem, size = 0x1000, scoped, tag = 'output window, operand 0, single buffered']
    %13 = vsyncpa [#allocation3], 0
    %14 = vsyncpa [#allocation6], 0
    %15 = vsyncpa [#allocation9], 0
    %16 = vsyncpa [#allocation4], 0
    // Predicated region
    $region2: #{tpu_custom_call.1} parent=1 // pred_check
      _
    $region3: #{tpu_custom_call.1} parent=1 // pred_check_branch
      %18 = sbr.rel (0) target = $region5
    $region4: #{tpu_custom_call.1} parent=1 // pred_region
      %s20 = ssub.s32 128, 128
      %21 = vsyncadd [#allocation3], %s20
      %s23 = sshll.u32 [#allocation2], 4
      %s24 = int_to_ptr.vmem [resolvable:$true] %s23
      %26 = dma.hbm_to_vmem [thread:$0]  %s0, 128, %s24, [#allocation3]
    $region5: #{tpu_custom_call.1} parent=1 // pred_fallthru
      _
    // Predicated region
    $region6: #{tpu_custom_call.1} parent=1 // pred_check
      _
    $region7: #{tpu_custom_call.1} parent=1 // pred_check_branch
      %28 = sbr.rel (0) target = $region9
    $region8: #{tpu_custom_call.1} parent=1 // pred_region
      %s30 = ssub.s32 128, 128
      %31 = vsyncadd [#allocation6], %s30
      %s33 = sshll.u32 [#allocation5], 4
      %s34 = int_to_ptr.vmem [resolvable:$true] %s33
      %36 = dma.hbm_to_vmem [thread:$0]  %s1, 128, %s34, [#allocation6]
    $region9: #{tpu_custom_call.1} parent=1 // pred_fallthru
      _
    // Predicated region
    $region10: #{tpu_custom_call.1} parent=1 // pred_check
      _
    $region11: #{tpu_custom_call.1} parent=1 // pred_check_branch
      %38 = sbr.rel (0) target = $region13
    $region12: #{tpu_custom_call.1} parent=1 // pred_region
      %s40 = ssub.s32 512, 512
      %41 = vsyncadd [#allocation6], %s40
      %s42 = sshll.u32 [#allocation7], 4
      %s43 = int_to_ptr.vmem [resolvable:$true] %s42
      %48 = dma.hbm_to_vmem [thread:$0]  %s2, 512, %s43, [#allocation6], 128, 128, 8
    $region13: #{tpu_custom_call.1} parent=1 // pred_fallthru
      _
    // Predicated region
    $region14: #{tpu_custom_call.1} parent=1 // pred_check
      _
    $region15: #{tpu_custom_call.1} parent=1 // pred_check_branch
      %50 = sbr.rel (0) target = $region17
    $region16: #{tpu_custom_call.1} parent=1 // pred_region
      _
    $region17: #{tpu_custom_call.1} parent=1 // pred_fallthru
      _
    // Predicated region
    $region18: #{tpu_custom_call.1} parent=1 // pred_check
      _
    $region19: #{tpu_custom_call.1} parent=1 // pred_check_branch
      %52 = sbr.rel (0) target = $region21
    $region20: #{tpu_custom_call.1} parent=1 // pred_region
      %s54 = ssub.s32 512, 512
      %55 = vsyncadd [#allocation9], %s54
      %s56 = sshll.u32 [#allocation8], 4
      %s57 = int_to_ptr.vmem [resolvable:$true] %s56
      %62 = dma.hbm_to_vmem [thread:$0]  %s4, 512, %s57, [#allocation9], 128, 128, 8
    $region21: #{tpu_custom_call.1} parent=1 // pred_fallthru
      _
    // Predicated region
    $region22: #{tpu_custom_call.1} parent=1 // pred_check
      _
    $region23: #{tpu_custom_call.1} parent=1 // pred_check_branch
      %64 = sbr.rel (0) target = $region25
    $region24: #{tpu_custom_call.1} parent=1 // pred_region
      _
    $region25: #{tpu_custom_call.1} parent=1 // pred_fallthru
      _
    // Predicated region
    $region26: #{tpu_custom_call.1} parent=1 // pred_check
      _
    $region27: #{tpu_custom_call.1} parent=1 // pred_check_branch
      %66 = sbr.rel (0) target = $region29
    $region28: #{tpu_custom_call.1} parent=1 // pred_region
      %s68 = ssub.s32 512, 512
      %69 = vsyncadd [#allocation9], %s68
      %s70 = sshll.u32 [#allocation10], 4
      %s71 = int_to_ptr.vmem [resolvable:$true] %s70
      %76 = dma.hbm_to_vmem [thread:$0]  %s6, 512, %s71, [#allocation9], 128, 128, 8
    $region29: #{tpu_custom_call.1} parent=1 // pred_fallthru
      _
    // Predicated region
    $region30: #{tpu_custom_call.1} parent=1 // pred_check
      _
    $region31: #{tpu_custom_call.1} parent=1 // pred_check_branch
      %78 = sbr.rel (0) target = $region33
    $region32: #{tpu_custom_call.1} parent=1 // pred_region
      _
    $region33: #{tpu_custom_call.1} parent=1 // pred_fallthru
      _
    // Predicated region
    $region34: #{tpu_custom_call.1} parent=1 // pred_check
      _
    $region35: #{tpu_custom_call.1} parent=1 // pred_check_branch
      %80 = sbr.rel (0) target = $region37
    $region36: #{tpu_custom_call.1} parent=1 // pred_region
      %81 = dma.done [#allocation3], 128
    $region37: #{tpu_custom_call.1} parent=1 // pred_fallthru
      _
    // Predicated region
    $region38: #{tpu_custom_call.1} parent=1 // pred_check
      _
    $region39: #{tpu_custom_call.1} parent=1 // pred_check_branch
      %83 = sbr.rel (0) target = $region41
    $region40: #{tpu_custom_call.1} parent=1 // pred_region
      %84 = dma.done [#allocation6], 128
    $region41: #{tpu_custom_call.1} parent=1 // pred_fallthru
      _
    // Predicated region
    $region42: #{tpu_custom_call.1} parent=1 // pred_check
      _
    $region43: #{tpu_custom_call.1} parent=1 // pred_check_branch
      %86 = sbr.rel (0) target = $region45
    $region44: #{tpu_custom_call.1} parent=1 // pred_region
      %87 = dma.done [#allocation6], 512
    $region45: #{tpu_custom_call.1} parent=1 // pred_fallthru
      _
    // Predicated region
    $region46: #{tpu_custom_call.1} parent=1 // pred_check
      _
    $region47: #{tpu_custom_call.1} parent=1 // pred_check_branch
      %89 = sbr.rel (0) target = $region49
    $region48: #{tpu_custom_call.1} parent=1 // pred_region
      %90 = dma.done [#allocation9], 512
    $region49: #{tpu_custom_call.1} parent=1 // pred_fallthru
      _
    // Predicated region
    $region50: #{tpu_custom_call.1} parent=1 // pred_check
      _
    $region51: #{tpu_custom_call.1} parent=1 // pred_check_branch
      %92 = sbr.rel (0) target = $region53
    $region52: #{tpu_custom_call.1} parent=1 // pred_region
      %93 = dma.done [#allocation9], 512
    $region53: #{tpu_custom_call.1} parent=1 // pred_fallthru
      _
    %v94 = vld [vmem:[#allocation2] sm:$0xff]
    %v95 = vld [vmem:[#allocation5] sm:$0xff]
    %v96 = vld [vmem:[#allocation7] sm:$0xff]
    %v97 = vld [vmem:[#allocation7 + $0x8] sm:$0xff]
    %v98 = vld [vmem:[#allocation7 + $0x10] sm:$0xff]
    %v99 = vld [vmem:[#allocation7 + $0x18] sm:$0xff]
    %v100 = vld [vmem:[%s3] sm:$0x1]
    %v102 = vlaneseq
    %v103 = vshrl.u32 %v102, 7
    %v104 = vsub.s32 0, %v103
    %v105 = vrot.slane %v100, %v104
    %vm107 = vcmask 261120
    %v109 = vsel %vm107, %v94, 0
    %111 = vmatprep.subr.mxu0 0.0
    %112 = vmatpush1.msra.mxu0 %v96
    %113 = vmatprep.subr.mxu0 0.0
    %114 = vmatpush1.msra.mxu0 %v97
    %115 = vmatprep.subr.mxu0 0.0
    %116 = vmatpush1.msra.mxu0 %v98
    %117 = vmatprep.subr.mxu0 0.0
    %118 = vmatpush1.msra.mxu0 %v99
    %119 = vmatprep.subr.mxu0 0.0
    %120 = vmatpush1.msra.mxu0 0.0
    %121 = vmatprep.subr.mxu0 0.0
    %122 = vmatpush1.msra.mxu0 0.0
    %123 = vmatprep.subr.mxu0 0.0
    %124 = vmatpush1.msra.mxu0 0.0
    %125 = vmatprep.subr.mxu0 0.0
    %126 = vmatpush1.msra.mxu0 0.0
    %127 = vmatprep.subr.mxu0 0.0
    %128 = vmatpush1.msra.mxu0 0.0
    %129 = vmatprep.subr.mxu0 0.0
    %130 = vmatpush1.msra.mxu0 0.0
    %131 = vmatprep.subr.mxu0 0.0
    %132 = vmatpush1.msra.mxu0 0.0
    %133 = vmatprep.subr.mxu0 0.0
    %134 = vmatpush1.msra.mxu0 0.0
    %135 = vmatprep.subr.mxu0 0.0
    %136 = vmatpush1.msra.mxu0 0.0
    %137 = vmatprep.subr.mxu0 0.0
    %138 = vmatpush1.msra.mxu0 0.0
    %139 = vmatprep.subr.mxu0 0.0
    %140 = vmatpush1.msra.mxu0 0.0
    %141 = vmatprep.subr.mxu0 0.0
    %142 = vmatpush1.msra.mxu0 0.0
    %143 = vmatprep.subr.mxu0 0.0
    %144 = vmatpush1.msra.mxu0 0.0
    %145 = vmatprep.subr.mxu0 0.0
    %146 = vmatpush1.msra.mxu0 0.0
    %147 = vmatprep.subr.mxu0 0.0
    %148 = vmatpush1.msra.mxu0 0.0
    %149 = vmatprep.subr.mxu0 0.0
    %150 = vmatpush1.msra.mxu0 0.0
    %151 = vmatprep.subr.mxu0 0.0
    %152 = vmatpush1.msra.mxu0 0.0
    %153 = vmatprep.subr.mxu0 0.0
    %154 = vmatpush1.msra.mxu0 0.0
    %155 = vmatprep.subr.mxu0 0.0
    %156 = vmatpush1.msra.mxu0 0.0
    %157 = vmatprep.subr.mxu0 0.0
    %158 = vmatpush1.msra.mxu0 0.0
    %159 = vmatprep.subr.mxu0 0.0
    %160 = vmatpush1.msra.mxu0 0.0
    %161 = vmatprep.subr.mxu0 0.0
    %162 = vmatpush1.msra.mxu0 0.0
    %163 = vmatprep.subr.mxu0 0.0
    %164 = vmatpush1.msra.mxu0 0.0
    %165 = vmatprep.subr.mxu0 0.0
    %166 = vmatpush1.msra.mxu0 0.0
    %167 = vmatprep.subr.mxu0 0.0
    %168 = vmatpush1.msra.mxu0 0.0
    %169 = vmatprep.subr.mxu0 0.0
    %170 = vmatpush1.msra.mxu0 0.0
    %171 = vmatprep.subr.mxu0 0.0
    %172 = vmatpush1.msra.mxu0 0.0
    %173 = vmatprep.subr.mxu0 0.0
    %174 = vmatpush1.msra.mxu0 0.0
    %175 = vmatprep.mubr.f32.mxu0 0.0
    %176 = vmatmul.mubr.f32.gmra.mrb[0].mxu0 %v109
    %v177 = vpop.f32.mrb[0].mxu0
    %v178 = vadd.f32 %v105, %v177
    %v179 = vpop.f32.mrb[0].mxu0
    %180 = vdwg.mxu0
    %v181 = vld [vmem:[#allocation8] sm:$0xff]
    %v182 = vld [vmem:[#allocation8 + $0x8] sm:$0xff]
    %v183 = vld [vmem:[#allocation8 + $0x10] sm:$0xff]
    %v184 = vld [vmem:[#allocation8 + $0x18] sm:$0xff]
    %v185 = vld [vmem:[%s5] sm:$0x1]
    %v187 = vlaneseq
    %v188 = vshrl.u32 %v187, 7
    %v189 = vsub.s32 0, %v188
    %v190 = vrot.slane %v185, %v189
    %v193 = vsel %vm107, %v95, 0
    %195 = vmatprep.subr.mxu0 0.0
    %196 = vmatpush1.msra.mxu0 %v181
    %197 = vmatprep.subr.mxu0 0.0
    %198 = vmatpush1.msra.mxu0 %v182
    %199 = vmatprep.subr.mxu0 0.0
    %200 = vmatpush1.msra.mxu0 %v183
    %201 = vmatprep.subr.mxu0 0.0
    %202 = vmatpush1.msra.mxu0 %v184
    %203 = vmatprep.subr.mxu0 0.0
    %204 = vmatpush1.msra.mxu0 0.0
    %205 = vmatprep.subr.mxu0 0.0
    %206 = vmatpush1.msra.mxu0 0.0
    %207 = vmatprep.subr.mxu0 0.0
    %208 = vmatpush1.msra.mxu0 0.0
    %209 = vmatprep.subr.mxu0 0.0
    %210 = vmatpush1.msra.mxu0 0.0
    %211 = vmatprep.subr.mxu0 0.0
    %212 = vmatpush1.msra.mxu0 0.0
    %213 = vmatprep.subr.mxu0 0.0
    %214 = vmatpush1.msra.mxu0 0.0
    %215 = vmatprep.subr.mxu0 0.0
    %216 = vmatpush1.msra.mxu0 0.0
    %217 = vmatprep.subr.mxu0 0.0
    %218 = vmatpush1.msra.mxu0 0.0
    %219 = vmatprep.subr.mxu0 0.0
    %220 = vmatpush1.msra.mxu0 0.0
    %221 = vmatprep.subr.mxu0 0.0
    %222 = vmatpush1.msra.mxu0 0.0
    %223 = vmatprep.subr.mxu0 0.0
    %224 = vmatpush1.msra.mxu0 0.0
    %225 = vmatprep.subr.mxu0 0.0
    %226 = vmatpush1.msra.mxu0 0.0
    %227 = vmatprep.subr.mxu0 0.0
    %228 = vmatpush1.msra.mxu0 0.0
    %229 = vmatprep.subr.mxu0 0.0
    %230 = vmatpush1.msra.mxu0 0.0
    %231 = vmatprep.subr.mxu0 0.0
    %232 = vmatpush1.msra.mxu0 0.0
    %233 = vmatprep.subr.mxu0 0.0
    %234 = vmatpush1.msra.mxu0 0.0
    %235 = vmatprep.subr.mxu0 0.0
    %236 = vmatpush1.msra.mxu0 0.0
    %237 = vmatprep.subr.mxu0 0.0
    %238 = vmatpush1.msra.mxu0 0.0
    %239 = vmatprep.subr.mxu0 0.0
    %240 = vmatpush1.msra.mxu0 0.0
    %241 = vmatprep.subr.mxu0 0.0
    %242 = vmatpush1.msra.mxu0 0.0
    %243 = vmatprep.subr.mxu0 0.0
    %244 = vmatpush1.msra.mxu0 0.0
    %245 = vmatprep.subr.mxu0 0.0
    %246 = vmatpush1.msra.mxu0 0.0
    %247 = vmatprep.subr.mxu0 0.0
    %248 = vmatpush1.msra.mxu0 0.0
    %249 = vmatprep.subr.mxu0 0.0
    %250 = vmatpush1.msra.mxu0 0.0
    %251 = vmatprep.subr.mxu0 0.0
    %252 = vmatpush1.msra.mxu0 0.0
    %253 = vmatprep.subr.mxu0 0.0
    %254 = vmatpush1.msra.mxu0 0.0
    %255 = vmatprep.subr.mxu0 0.0
    %256 = vmatpush1.msra.mxu0 0.0
    %257 = vmatprep.subr.mxu0 0.0
    %258 = vmatpush1.msra.mxu0 0.0
    %259 = vmatprep.mubr.f32.mxu0 0.0
    %260 = vmatmul.mubr.f32.gmra.mrb[0].mxu0 %v193
    %v261 = vpop.f32.mrb[0].mxu0
    %v262 = vadd.f32 %v190, %v261
    %v263 = vpop.f32.mrb[0].mxu0
    %264 = vdwg.mxu0
    %266 = vrot.lane.b32.xlu0 %v178, 120
    %v267 = vpop.permute.xlu0 %266
    %269 = vrot.lane.b32.xlu0 %v178, 112
    %v270 = vpop.permute.xlu0 %269
    %272 = vrot.lane.b32.xlu0 %v178, 104
    %v273 = vpop.permute.xlu0 %272
    %v275 = vcombine.low %v178, %v270
    %v276 = vcombine.high %v178, %v270
    %v278 = vunpack.c.l.s4 1983009808
    %v279 = vunpack.c.0.s8 %v278
    %v280 = vlaneseq
    %v281 = vshrl.u32 %v280, 7
    %v282 = vsub.s32 %v279, %v281
    %v283 = vrot.slane %v275, %v282
    %v285 = vunpack.c.l.s4 1983009808
    %v286 = vunpack.c.0.s8 %v285
    %v287 = vlaneseq
    %v288 = vshrl.u32 %v287, 7
    %v289 = vsub.s32 %v286, %v288
    %v290 = vrot.slane %v276, %v289
    %v291 = vcombine.low %v267, %v273
    %v292 = vcombine.high %v267, %v273
    %v294 = vunpack.c.l.s4 1983009808
    %v295 = vunpack.c.0.s8 %v294
    %v296 = vlaneseq
    %v297 = vshrl.u32 %v296, 7
    %v298 = vsub.s32 %v295, %v297
    %v299 = vrot.slane %v291, %v298
    %v301 = vunpack.c.l.s4 1983009808
    %v302 = vunpack.c.0.s8 %v301
    %v303 = vlaneseq
    %v304 = vshrl.u32 %v303, 7
    %v305 = vsub.s32 %v302, %v304
    %v306 = vrot.slane %v292, %v305
    %v307 = vcombine.low %v283, %v299
    %v308 = vcombine.high %v283, %v299
    %v310 = vunpack.c.l.s4 1934713408
    %v311 = vunpack.c.0.s8 %v310
    %v312 = vlaneseq
    %v313 = vshrl.u32 %v312, 7
    %v314 = vsub.s32 %v311, %v313
    %v315 = vrot.slane %v307, %v314
    %v317 = vunpack.c.l.s4 1934713408
    %v318 = vunpack.c.0.s8 %v317
    %v319 = vlaneseq
    %v320 = vshrl.u32 %v319, 7
    %v321 = vsub.s32 %v318, %v320
    %v322 = vrot.slane %v308, %v321
    %v323 = vcombine.low %v290, %v306
    %v324 = vcombine.high %v290, %v306
    %v326 = vunpack.c.l.s4 1934713408
    %v327 = vunpack.c.0.s8 %v326
    %v328 = vlaneseq
    %v329 = vshrl.u32 %v328, 7
    %v330 = vsub.s32 %v327, %v329
    %v331 = vrot.slane %v323, %v330
    %v333 = vunpack.c.l.s4 1934713408
    %v334 = vunpack.c.0.s8 %v333
    %v335 = vlaneseq
    %v336 = vshrl.u32 %v335, 7
    %v337 = vsub.s32 %v334, %v336
    %v338 = vrot.slane %v324, %v337
    %v339 = vcombine.high %v315, 0.0
    %v340 = vcombine.high %v322, 0.0
    %v341 = vcombine.high %v331, 0.0
    %v342 = vcombine.high %v338, 0.0
    %v343 = vcombine.low %v315, %v322
    %v345 = vunpack.c.l.s4 1983009808
    %v346 = vunpack.c.0.s8 %v345
    %v347 = vlaneseq
    %v348 = vshrl.u32 %v347, 7
    %v349 = vsub.s32 %v346, %v348
    %v350 = vrot.slane %v343, %v349
    %v351 = vcombine.low %v339, %v340
    %v353 = vunpack.c.l.s4 1983009808
    %v354 = vunpack.c.0.s8 %v353
    %v355 = vlaneseq
    %v356 = vshrl.u32 %v355, 7
    %v357 = vsub.s32 %v354, %v356
    %v358 = vrot.slane %v351, %v357
    %v359 = vcombine.low %v331, %v338
    %v361 = vunpack.c.l.s4 1983009808
    %v362 = vunpack.c.0.s8 %v361
    %v363 = vlaneseq
    %v364 = vshrl.u32 %v363, 7
    %v365 = vsub.s32 %v362, %v364
    %v366 = vrot.slane %v359, %v365
    %v367 = vcombine.low %v341, %v342
    %v369 = vunpack.c.l.s4 1983009808
    %v370 = vunpack.c.0.s8 %v369
    %v371 = vlaneseq
    %v372 = vshrl.u32 %v371, 7
    %v373 = vsub.s32 %v370, %v372
    %v374 = vrot.slane %v367, %v373
    %v375 = vcombine.low %v350, %v358
    %v376 = vcombine.high %v350, %v358
    %v378 = vunpack.c.l.s4 1934713408
    %v379 = vunpack.c.0.s8 %v378
    %v380 = vlaneseq
    %v381 = vshrl.u32 %v380, 7
    %v382 = vsub.s32 %v379, %v381
    %v383 = vrot.slane %v375, %v382
    %v385 = vunpack.c.l.s4 1934713408
    %v386 = vunpack.c.0.s8 %v385
    %v387 = vlaneseq
    %v388 = vshrl.u32 %v387, 7
    %v389 = vsub.s32 %v386, %v388
    %v390 = vrot.slane %v376, %v389
    %v391 = vcombine.low %v366, %v374
    %v392 = vcombine.high %v366, %v374
    %v394 = vunpack.c.l.s4 1934713408
    %v395 = vunpack.c.0.s8 %v394
    %v396 = vlaneseq
    %v397 = vshrl.u32 %v396, 7
    %v398 = vsub.s32 %v395, %v397
    %v399 = vrot.slane %v391, %v398
    %v401 = vunpack.c.l.s4 1934713408
    %v402 = vunpack.c.0.s8 %v401
    %v403 = vlaneseq
    %v404 = vshrl.u32 %v403, 7
    %v405 = vsub.s32 %v402, %v404
    %v406 = vrot.slane %v392, %v405
    %v407 = vcombine.low %v383, %v399
    %v408 = vcombine.high %v383, %v399
    %v409 = vcombine.low %v390, %v406
    %v410 = vcombine.high %v390, %v406
    %412 = vrot.lane.b32.xlu0 %v262, 120
    %v413 = vpop.permute.xlu0 %412
    %415 = vrot.lane.b32.xlu0 %v262, 112
    %v416 = vpop.permute.xlu0 %415
    %418 = vrot.lane.b32.xlu0 %v262, 104
    %v419 = vpop.permute.xlu0 %418
    %v421 = vcombine.low %v262, %v416
    %v422 = vcombine.high %v262, %v416
    %v424 = vunpack.c.l.s4 1983009808
    %v425 = vunpack.c.0.s8 %v424
    %v426 = vlaneseq
    %v427 = vshrl.u32 %v426, 7
    %v428 = vsub.s32 %v425, %v427
    %v429 = vrot.slane %v421, %v428
    %v431 = vunpack.c.l.s4 1983009808
    %v432 = vunpack.c.0.s8 %v431
    %v433 = vlaneseq
    %v434 = vshrl.u32 %v433, 7
    %v435 = vsub.s32 %v432, %v434
    %v436 = vrot.slane %v422, %v435
    %v437 = vcombine.low %v413, %v419
    %v438 = vcombine.high %v413, %v419
    %v440 = vunpack.c.l.s4 1983009808
    %v441 = vunpack.c.0.s8 %v440
    %v442 = vlaneseq
    %v443 = vshrl.u32 %v442, 7
    %v444 = vsub.s32 %v441, %v443
    %v445 = vrot.slane %v437, %v444
    %v447 = vunpack.c.l.s4 1983009808
    %v448 = vunpack.c.0.s8 %v447
    %v449 = vlaneseq
    %v450 = vshrl.u32 %v449, 7
    %v451 = vsub.s32 %v448, %v450
    %v452 = vrot.slane %v438, %v451
    %v453 = vcombine.low %v429, %v445
    %v454 = vcombine.high %v429, %v445
    %v456 = vunpack.c.l.s4 1934713408
    %v457 = vunpack.c.0.s8 %v456
    %v458 = vlaneseq
    %v459 = vshrl.u32 %v458, 7
    %v460 = vsub.s32 %v457, %v459
    %v461 = vrot.slane %v453, %v460
    %v463 = vunpack.c.l.s4 1934713408
    %v464 = vunpack.c.0.s8 %v463
    %v465 = vlaneseq
    %v466 = vshrl.u32 %v465, 7
    %v467 = vsub.s32 %v464, %v466
    %v468 = vrot.slane %v454, %v467
    %v469 = vcombine.low %v436, %v452
    %v470 = vcombine.high %v436, %v452
    %v472 = vunpack.c.l.s4 1934713408
    %v473 = vunpack.c.0.s8 %v472
    %v474 = vlaneseq
    %v475 = vshrl.u32 %v474, 7
    %v476 = vsub.s32 %v473, %v475
    %v477 = vrot.slane %v469, %v476
    %v479 = vunpack.c.l.s4 1934713408
    %v480 = vunpack.c.0.s8 %v479
    %v481 = vlaneseq
    %v482 = vshrl.u32 %v481, 7
    %v483 = vsub.s32 %v480, %v482
    %v484 = vrot.slane %v470, %v483
    %v485 = vcombine.high %v461, 0.0
    %v486 = vcombine.high %v468, 0.0
    %v487 = vcombine.high %v477, 0.0
    %v488 = vcombine.high %v484, 0.0
    %v489 = vcombine.low %v461, %v468
    %v491 = vunpack.c.l.s4 1983009808
    %v492 = vunpack.c.0.s8 %v491
    %v493 = vlaneseq
    %v494 = vshrl.u32 %v493, 7
    %v495 = vsub.s32 %v492, %v494
    %v496 = vrot.slane %v489, %v495
    %v497 = vcombine.low %v485, %v486
    %v499 = vunpack.c.l.s4 1983009808
    %v500 = vunpack.c.0.s8 %v499
    %v501 = vlaneseq
    %v502 = vshrl.u32 %v501, 7
    %v503 = vsub.s32 %v500, %v502
    %v504 = vrot.slane %v497, %v503
    %v505 = vcombine.low %v477, %v484
    %v507 = vunpack.c.l.s4 1983009808
    %v508 = vunpack.c.0.s8 %v507
    %v509 = vlaneseq
    %v510 = vshrl.u32 %v509, 7
    %v511 = vsub.s32 %v508, %v510
    %v512 = vrot.slane %v505, %v511
    %v513 = vcombine.low %v487, %v488
    %v515 = vunpack.c.l.s4 1983009808
    %v516 = vunpack.c.0.s8 %v515
    %v517 = vlaneseq
    %v518 = vshrl.u32 %v517, 7
    %v519 = vsub.s32 %v516, %v518
    %v520 = vrot.slane %v513, %v519
    %v521 = vcombine.low %v496, %v504
    %v522 = vcombine.high %v496, %v504
    %v524 = vunpack.c.l.s4 1934713408
    %v525 = vunpack.c.0.s8 %v524
    %v526 = vlaneseq
    %v527 = vshrl.u32 %v526, 7
    %v528 = vsub.s32 %v525, %v527
    %v529 = vrot.slane %v521, %v528
    %v531 = vunpack.c.l.s4 1934713408
    %v532 = vunpack.c.0.s8 %v531
    %v533 = vlaneseq
    %v534 = vshrl.u32 %v533, 7
    %v535 = vsub.s32 %v532, %v534
    %v536 = vrot.slane %v522, %v535
    %v537 = vcombine.low %v512, %v520
    %v538 = vcombine.high %v512, %v520
    %v540 = vunpack.c.l.s4 1934713408
    %v541 = vunpack.c.0.s8 %v540
    %v542 = vlaneseq
    %v543 = vshrl.u32 %v542, 7
    %v544 = vsub.s32 %v541, %v543
    %v545 = vrot.slane %v537, %v544
    %v547 = vunpack.c.l.s4 1934713408
    %v548 = vunpack.c.0.s8 %v547
    %v549 = vlaneseq
    %v550 = vshrl.u32 %v549, 7
    %v551 = vsub.s32 %v548, %v550
    %v552 = vrot.slane %v538, %v551
    %v553 = vcombine.low %v529, %v545
    %v554 = vcombine.high %v529, %v545
    %v555 = vcombine.low %v536, %v552
    %v556 = vcombine.high %v536, %v552
    %557 = vrot.lane.b32.xlu0 %v262, 96
    %v558 = vpop.permute.xlu0 %557
    %559 = vrot.lane.b32.xlu0 %v413, 96
    %v560 = vpop.permute.xlu0 %559
    %561 = vrot.lane.b32.xlu0 %v416, 96
    %v562 = vpop.permute.xlu0 %561
    %563 = vrot.lane.b32.xlu0 %v419, 96
    %v564 = vpop.permute.xlu0 %563
    %v569 = vcombine.low %v558, %v562
    %v570 = vcombine.high %v558, %v562
    %v572 = vunpack.c.l.s4 1983009808
    %v573 = vunpack.c.0.s8 %v572
    %v574 = vlaneseq
    %v575 = vshrl.u32 %v574, 7
    %v576 = vsub.s32 %v573, %v575
    %v577 = vrot.slane %v569, %v576
    %v579 = vunpack.c.l.s4 1983009808
    %v580 = vunpack.c.0.s8 %v579
    %v581 = vlaneseq
    %v582 = vshrl.u32 %v581, 7
    %v583 = vsub.s32 %v580, %v582
    %v584 = vrot.slane %v570, %v583
    %v585 = vcombine.low %v560, %v564
    %v586 = vcombine.high %v560, %v564
    %v588 = vunpack.c.l.s4 1983009808
    %v589 = vunpack.c.0.s8 %v588
    %v590 = vlaneseq
    %v591 = vshrl.u32 %v590, 7
    %v592 = vsub.s32 %v589, %v591
    %v593 = vrot.slane %v585, %v592
    %v595 = vunpack.c.l.s4 1983009808
    %v596 = vunpack.c.0.s8 %v595
    %v597 = vlaneseq
    %v598 = vshrl.u32 %v597, 7
    %v599 = vsub.s32 %v596, %v598
    %v600 = vrot.slane %v586, %v599
    %v601 = vcombine.low %v577, %v593
    %v602 = vcombine.high %v577, %v593
    %v604 = vunpack.c.l.s4 1934713408
    %v605 = vunpack.c.0.s8 %v604
    %v606 = vlaneseq
    %v607 = vshrl.u32 %v606, 7
    %v608 = vsub.s32 %v605, %v607
    %v609 = vrot.slane %v601, %v608
    %v611 = vunpack.c.l.s4 1934713408
    %v612 = vunpack.c.0.s8 %v611
    %v613 = vlaneseq
    %v614 = vshrl.u32 %v613, 7
    %v615 = vsub.s32 %v612, %v614
    %v616 = vrot.slane %v602, %v615
    %v617 = vcombine.low %v584, %v600
    %v618 = vcombine.high %v584, %v600
    %v620 = vunpack.c.l.s4 1934713408
    %v621 = vunpack.c.0.s8 %v620
    %v622 = vlaneseq
    %v623 = vshrl.u32 %v622, 7
    %v624 = vsub.s32 %v621, %v623
    %v625 = vrot.slane %v617, %v624
    %v627 = vunpack.c.l.s4 1934713408
    %v628 = vunpack.c.0.s8 %v627
    %v629 = vlaneseq
    %v630 = vshrl.u32 %v629, 7
    %v631 = vsub.s32 %v628, %v630
    %v632 = vrot.slane %v618, %v631
    %v633 = vcombine.high %v609, 0.0
    %v634 = vcombine.high %v616, 0.0
    %v635 = vcombine.high %v625, 0.0
    %v636 = vcombine.high %v632, 0.0
    %v637 = vcombine.low %v609, %v616
    %v639 = vunpack.c.l.s4 1983009808
    %v640 = vunpack.c.0.s8 %v639
    %v641 = vlaneseq
    %v642 = vshrl.u32 %v641, 7
    %v643 = vsub.s32 %v640, %v642
    %v644 = vrot.slane %v637, %v643
    %v645 = vcombine.low %v633, %v634
    %v647 = vunpack.c.l.s4 1983009808
    %v648 = vunpack.c.0.s8 %v647
    %v649 = vlaneseq
    %v650 = vshrl.u32 %v649, 7
    %v651 = vsub.s32 %v648, %v650
    %v652 = vrot.slane %v645, %v651
    %v653 = vcombine.low %v625, %v632
    %v655 = vunpack.c.l.s4 1983009808
    %v656 = vunpack.c.0.s8 %v655
    %v657 = vlaneseq
    %v658 = vshrl.u32 %v657, 7
    %v659 = vsub.s32 %v656, %v658
    %v660 = vrot.slane %v653, %v659
    %v661 = vcombine.low %v635, %v636
    %v663 = vunpack.c.l.s4 1983009808
    %v664 = vunpack.c.0.s8 %v663
    %v665 = vlaneseq
    %v666 = vshrl.u32 %v665, 7
    %v667 = vsub.s32 %v664, %v666
    %v668 = vrot.slane %v661, %v667
    %v669 = vcombine.low %v644, %v652
    %v670 = vcombine.high %v644, %v652
    %v672 = vunpack.c.l.s4 1934713408
    %v673 = vunpack.c.0.s8 %v672
    %v674 = vlaneseq
    %v675 = vshrl.u32 %v674, 7
    %v676 = vsub.s32 %v673, %v675
    %v677 = vrot.slane %v669, %v676
    %v679 = vunpack.c.l.s4 1934713408
    %v680 = vunpack.c.0.s8 %v679
    %v681 = vlaneseq
    %v682 = vshrl.u32 %v681, 7
    %v683 = vsub.s32 %v680, %v682
    %v684 = vrot.slane %v670, %v683
    %v685 = vcombine.low %v660, %v668
    %v686 = vcombine.high %v660, %v668
    %v688 = vunpack.c.l.s4 1934713408
    %v689 = vunpack.c.0.s8 %v688
    %v690 = vlaneseq
    %v691 = vshrl.u32 %v690, 7
    %v692 = vsub.s32 %v689, %v691
    %v693 = vrot.slane %v685, %v692
    %v695 = vunpack.c.l.s4 1934713408
    %v696 = vunpack.c.0.s8 %v695
    %v697 = vlaneseq
    %v698 = vshrl.u32 %v697, 7
    %v699 = vsub.s32 %v696, %v698
    %v700 = vrot.slane %v686, %v699
    %v701 = vcombine.low %v677, %v693
    %v702 = vcombine.high %v677, %v693
    %v703 = vcombine.low %v684, %v700
    %v704 = vcombine.high %v684, %v700
    %s705 = smul.u32 0, 8
    %v706 = vlaneseq
    %v707 = vshrl.u32 %v706, 7
    %v708 = vstv %s705
    %v709 = vadd.s32 %v707, %v708
    %v710 = vlaneseq
    %v711 = vand.u32 %v710, 127
    %vm712 = vcmp.lt.s32.totalorder %v709, 4
    %vm713 = vcmp.gt.s32.totalorder %v711, %v709
    %vm714 = vmand %vm712, %vm713
    %v715 = vsel %vm714, -1e+09, 0.0
    %vm716 = vcmask 64512
    %v718 = vsel %vm716, %v407, 0
    %v721 = vsel %vm716, %v553, 0
    %723 = vmatprep.subr.mxu0 0.0
    %724 = vmatpush1.xpose.msra.mxu0 %v721
    %725 = vmatprep.subr.mxu0 0.0
    %726 = vmatpush1.xpose.msra.mxu0 0.0
    %727 = vmatprep.subr.mxu0 0.0
    %728 = vmatpush1.xpose.msra.mxu0 0.0
    %729 = vmatprep.subr.mxu0 0.0
    %730 = vmatpush1.xpose.msra.mxu0 0.0
    %731 = vmatprep.subr.mxu0 0.0
    %732 = vmatpush1.xpose.msra.mxu0 0.0
    %733 = vmatprep.subr.mxu0 0.0
    %734 = vmatpush1.xpose.msra.mxu0 0.0
    %735 = vmatprep.subr.mxu0 0.0
    %736 = vmatpush1.xpose.msra.mxu0 0.0
    %737 = vmatprep.subr.mxu0 0.0
    %738 = vmatpush1.xpose.msra.mxu0 0.0
    %739 = vmatprep.subr.mxu0 0.0
    %740 = vmatpush1.xpose.msra.mxu0 0.0
    %741 = vmatprep.subr.mxu0 0.0
    %742 = vmatpush1.xpose.msra.mxu0 0.0
    %743 = vmatprep.subr.mxu0 0.0
    %744 = vmatpush1.xpose.msra.mxu0 0.0
    %745 = vmatprep.subr.mxu0 0.0
    %746 = vmatpush1.xpose.msra.mxu0 0.0
    %747 = vmatprep.subr.mxu0 0.0
    %748 = vmatpush1.xpose.msra.mxu0 0.0
    %749 = vmatprep.subr.mxu0 0.0
    %750 = vmatpush1.xpose.msra.mxu0 0.0
    %751 = vmatprep.subr.mxu0 0.0
    %752 = vmatpush1.xpose.msra.mxu0 0.0
    %753 = vmatprep.subr.mxu0 0.0
    %754 = vmatpush1.xpose.msra.mxu0 0.0
    %755 = vmatprep.subr.mxu0 0.0
    %756 = vmatpush1.xpose.msra.mxu0 0.0
    %757 = vmatprep.subr.mxu0 0.0
    %758 = vmatpush1.xpose.msra.mxu0 0.0
    %759 = vmatprep.subr.mxu0 0.0
    %760 = vmatpush1.xpose.msra.mxu0 0.0
    %761 = vmatprep.subr.mxu0 0.0
    %762 = vmatpush1.xpose.msra.mxu0 0.0
    %763 = vmatprep.subr.mxu0 0.0
    %764 = vmatpush1.xpose.msra.mxu0 0.0
    %765 = vmatprep.subr.mxu0 0.0
    %766 = vmatpush1.xpose.msra.mxu0 0.0
    %767 = vmatprep.subr.mxu0 0.0
    %768 = vmatpush1.xpose.msra.mxu0 0.0
    %769 = vmatprep.subr.mxu0 0.0
    %770 = vmatpush1.xpose.msra.mxu0 0.0
    %771 = vmatprep.subr.mxu0 0.0
    %772 = vmatpush1.xpose.msra.mxu0 0.0
    %773 = vmatprep.subr.mxu0 0.0
    %774 = vmatpush1.xpose.msra.mxu0 0.0
    %775 = vmatprep.subr.mxu0 0.0
    %776 = vmatpush1.xpose.msra.mxu0 0.0
    %777 = vmatprep.subr.mxu0 0.0
    %778 = vmatpush1.xpose.msra.mxu0 0.0
    %779 = vmatprep.subr.mxu0 0.0
    %780 = vmatpush1.xpose.msra.mxu0 0.0
    %781 = vmatprep.subr.mxu0 0.0
    %782 = vmatpush1.xpose.msra.mxu0 0.0
    %783 = vmatprep.subr.mxu0 0.0
    %784 = vmatpush1.xpose.msra.mxu0 0.0
    %785 = vmatprep.subr.mxu0 0.0
    %786 = vmatpush1.xpose.msra.mxu0 0.0
    %787 = vmatprep.mubr.f32.mxu0 0.0
    %788 = vmatmul.mubr.f32.gmra.mrb[0].mxu0 %v718
    %v789 = vpop.f32.mrb[0].mxu0
    %v790 = vadd.f32 %v715, %v789
    %v791 = vpop.f32.mrb[0].mxu0
    %792 = vdwg.mxu0
    %v794 = vsel %vm716, %v408, 0
    %v797 = vsel %vm716, %v554, 0
    %799 = vmatprep.subr.mxu0 0.0
    %800 = vmatpush1.xpose.msra.mxu0 %v797
    %801 = vmatprep.subr.mxu0 0.0
    %802 = vmatpush1.xpose.msra.mxu0 0.0
    %803 = vmatprep.subr.mxu0 0.0
    %804 = vmatpush1.xpose.msra.mxu0 0.0
    %805 = vmatprep.subr.mxu0 0.0
    %806 = vmatpush1.xpose.msra.mxu0 0.0
    %807 = vmatprep.subr.mxu0 0.0
    %808 = vmatpush1.xpose.msra.mxu0 0.0
    %809 = vmatprep.subr.mxu0 0.0
    %810 = vmatpush1.xpose.msra.mxu0 0.0
    %811 = vmatprep.subr.mxu0 0.0
    %812 = vmatpush1.xpose.msra.mxu0 0.0
    %813 = vmatprep.subr.mxu0 0.0
    %814 = vmatpush1.xpose.msra.mxu0 0.0
    %815 = vmatprep.subr.mxu0 0.0
    %816 = vmatpush1.xpose.msra.mxu0 0.0
    %817 = vmatprep.subr.mxu0 0.0
    %818 = vmatpush1.xpose.msra.mxu0 0.0
    %819 = vmatprep.subr.mxu0 0.0
    %820 = vmatpush1.xpose.msra.mxu0 0.0
    %821 = vmatprep.subr.mxu0 0.0
    %822 = vmatpush1.xpose.msra.mxu0 0.0
    %823 = vmatprep.subr.mxu0 0.0
    %824 = vmatpush1.xpose.msra.mxu0 0.0
    %825 = vmatprep.subr.mxu0 0.0
    %826 = vmatpush1.xpose.msra.mxu0 0.0
    %827 = vmatprep.subr.mxu0 0.0
    %828 = vmatpush1.xpose.msra.mxu0 0.0
    %829 = vmatprep.subr.mxu0 0.0
    %830 = vmatpush1.xpose.msra.mxu0 0.0
    %831 = vmatprep.subr.mxu0 0.0
    %832 = vmatpush1.xpose.msra.mxu0 0.0
    %833 = vmatprep.subr.mxu0 0.0
    %834 = vmatpush1.xpose.msra.mxu0 0.0
    %835 = vmatprep.subr.mxu0 0.0
    %836 = vmatpush1.xpose.msra.mxu0 0.0
    %837 = vmatprep.subr.mxu0 0.0
    %838 = vmatpush1.xpose.msra.mxu0 0.0
    %839 = vmatprep.subr.mxu0 0.0
    %840 = vmatpush1.xpose.msra.mxu0 0.0
    %841 = vmatprep.subr.mxu0 0.0
    %842 = vmatpush1.xpose.msra.mxu0 0.0
    %843 = vmatprep.subr.mxu0 0.0
    %844 = vmatpush1.xpose.msra.mxu0 0.0
    %845 = vmatprep.subr.mxu0 0.0
    %846 = vmatpush1.xpose.msra.mxu0 0.0
    %847 = vmatprep.subr.mxu0 0.0
    %848 = vmatpush1.xpose.msra.mxu0 0.0
    %849 = vmatprep.subr.mxu0 0.0
    %850 = vmatpush1.xpose.msra.mxu0 0.0
    %851 = vmatprep.subr.mxu0 0.0
    %852 = vmatpush1.xpose.msra.mxu0 0.0
    %853 = vmatprep.subr.mxu0 0.0
    %854 = vmatpush1.xpose.msra.mxu0 0.0
    %855 = vmatprep.subr.mxu0 0.0
    %856 = vmatpush1.xpose.msra.mxu0 0.0
    %857 = vmatprep.subr.mxu0 0.0
    %858 = vmatpush1.xpose.msra.mxu0 0.0
    %859 = vmatprep.subr.mxu0 0.0
    %860 = vmatpush1.xpose.msra.mxu0 0.0
    %861 = vmatprep.subr.mxu0 0.0
    %862 = vmatpush1.xpose.msra.mxu0 0.0
    %863 = vmatprep.mubr.f32.mxu0 0.0
    %864 = vmatmul.mubr.f32.gmra.mrb[0].mxu0 %v794
    %v865 = vpop.f32.mrb[0].mxu0
    %v866 = vadd.f32 %v715, %v865
    %v867 = vpop.f32.mrb[0].mxu0
    %868 = vdwg.mxu0
    %v870 = vsel %vm716, %v409, 0
    %v873 = vsel %vm716, %v555, 0
    %875 = vmatprep.subr.mxu0 0.0
    %876 = vmatpush1.xpose.msra.mxu0 %v873
    %877 = vmatprep.subr.mxu0 0.0
    %878 = vmatpush1.xpose.msra.mxu0 0.0
    %879 = vmatprep.subr.mxu0 0.0
    %880 = vmatpush1.xpose.msra.mxu0 0.0
    %881 = vmatprep.subr.mxu0 0.0
    %882 = vmatpush1.xpose.msra.mxu0 0.0
    %883 = vmatprep.subr.mxu0 0.0
    %884 = vmatpush1.xpose.msra.mxu0 0.0
    %885 = vmatprep.subr.mxu0 0.0
    %886 = vmatpush1.xpose.msra.mxu0 0.0
    %887 = vmatprep.subr.mxu0 0.0
    %888 = vmatpush1.xpose.msra.mxu0 0.0
    %889 = vmatprep.subr.mxu0 0.0
    %890 = vmatpush1.xpose.msra.mxu0 0.0
    %891 = vmatprep.subr.mxu0 0.0
    %892 = vmatpush1.xpose.msra.mxu0 0.0
    %893 = vmatprep.subr.mxu0 0.0
    %894 = vmatpush1.xpose.msra.mxu0 0.0
    %895 = vmatprep.subr.mxu0 0.0
    %896 = vmatpush1.xpose.msra.mxu0 0.0
    %897 = vmatprep.subr.mxu0 0.0
    %898 = vmatpush1.xpose.msra.mxu0 0.0
    %899 = vmatprep.subr.mxu0 0.0
    %900 = vmatpush1.xpose.msra.mxu0 0.0
    %901 = vmatprep.subr.mxu0 0.0
    %902 = vmatpush1.xpose.msra.mxu0 0.0
    %903 = vmatprep.subr.mxu0 0.0
    %904 = vmatpush1.xpose.msra.mxu0 0.0
    %905 = vmatprep.subr.mxu0 0.0
    %906 = vmatpush1.xpose.msra.mxu0 0.0
    %907 = vmatprep.subr.mxu0 0.0
    %908 = vmatpush1.xpose.msra.mxu0 0.0
    %909 = vmatprep.subr.mxu0 0.0
    %910 = vmatpush1.xpose.msra.mxu0 0.0
    %911 = vmatprep.subr.mxu0 0.0
    %912 = vmatpush1.xpose.msra.mxu0 0.0
    %913 = vmatprep.subr.mxu0 0.0
    %914 = vmatpush1.xpose.msra.mxu0 0.0
    %915 = vmatprep.subr.mxu0 0.0
    %916 = vmatpush1.xpose.msra.mxu0 0.0
    %917 = vmatprep.subr.mxu0 0.0
    %918 = vmatpush1.xpose.msra.mxu0 0.0
    %919 = vmatprep.subr.mxu0 0.0
    %920 = vmatpush1.xpose.msra.mxu0 0.0
    %921 = vmatprep.subr.mxu0 0.0
    %922 = vmatpush1.xpose.msra.mxu0 0.0
    %923 = vmatprep.subr.mxu0 0.0
    %924 = vmatpush1.xpose.msra.mxu0 0.0
    %925 = vmatprep.subr.mxu0 0.0
    %926 = vmatpush1.xpose.msra.mxu0 0.0
    %927 = vmatprep.subr.mxu0 0.0
    %928 = vmatpush1.xpose.msra.mxu0 0.0
    %929 = vmatprep.subr.mxu0 0.0
    %930 = vmatpush1.xpose.msra.mxu0 0.0
    %931 = vmatprep.subr.mxu0 0.0
    %932 = vmatpush1.xpose.msra.mxu0 0.0
    %933 = vmatprep.subr.mxu0 0.0
    %934 = vmatpush1.xpose.msra.mxu0 0.0
    %935 = vmatprep.subr.mxu0 0.0
    %936 = vmatpush1.xpose.msra.mxu0 0.0
    %937 = vmatprep.subr.mxu0 0.0
    %938 = vmatpush1.xpose.msra.mxu0 0.0
    %939 = vmatprep.mubr.f32.mxu0 0.0
    %940 = vmatmul.mubr.f32.gmra.mrb[0].mxu0 %v870
    %v941 = vpop.f32.mrb[0].mxu0
    %v942 = vadd.f32 %v715, %v941
    %v943 = vpop.f32.mrb[0].mxu0
    %944 = vdwg.mxu0
    %v946 = vsel %vm716, %v410, 0
    %v949 = vsel %vm716, %v556, 0
    %951 = vmatprep.subr.mxu0 0.0
    %952 = vmatpush1.xpose.msra.mxu0 %v949
    %953 = vmatprep.subr.mxu0 0.0
    %954 = vmatpush1.xpose.msra.mxu0 0.0
    %955 = vmatprep.subr.mxu0 0.0
    %956 = vmatpush1.xpose.msra.mxu0 0.0
    %957 = vmatprep.subr.mxu0 0.0
    %958 = vmatpush1.xpose.msra.mxu0 0.0
    %959 = vmatprep.subr.mxu0 0.0
    %960 = vmatpush1.xpose.msra.mxu0 0.0
    %961 = vmatprep.subr.mxu0 0.0
    %962 = vmatpush1.xpose.msra.mxu0 0.0
    %963 = vmatprep.subr.mxu0 0.0
    %964 = vmatpush1.xpose.msra.mxu0 0.0
    %965 = vmatprep.subr.mxu0 0.0
    %966 = vmatpush1.xpose.msra.mxu0 0.0
    %967 = vmatprep.subr.mxu0 0.0
    %968 = vmatpush1.xpose.msra.mxu0 0.0
    %969 = vmatprep.subr.mxu0 0.0
    %970 = vmatpush1.xpose.msra.mxu0 0.0
    %971 = vmatprep.subr.mxu0 0.0
    %972 = vmatpush1.xpose.msra.mxu0 0.0
    %973 = vmatprep.subr.mxu0 0.0
    %974 = vmatpush1.xpose.msra.mxu0 0.0
    %975 = vmatprep.subr.mxu0 0.0
    %976 = vmatpush1.xpose.msra.mxu0 0.0
    %977 = vmatprep.subr.mxu0 0.0
    %978 = vmatpush1.xpose.msra.mxu0 0.0
    %979 = vmatprep.subr.mxu0 0.0
    %980 = vmatpush1.xpose.msra.mxu0 0.0
    %981 = vmatprep.subr.mxu0 0.0
    %982 = vmatpush1.xpose.msra.mxu0 0.0
    %983 = vmatprep.subr.mxu0 0.0
    %984 = vmatpush1.xpose.msra.mxu0 0.0
    %985 = vmatprep.subr.mxu0 0.0
    %986 = vmatpush1.xpose.msra.mxu0 0.0
    %987 = vmatprep.subr.mxu0 0.0
    %988 = vmatpush1.xpose.msra.mxu0 0.0
    %989 = vmatprep.subr.mxu0 0.0
    %990 = vmatpush1.xpose.msra.mxu0 0.0
    %991 = vmatprep.subr.mxu0 0.0
    %992 = vmatpush1.xpose.msra.mxu0 0.0
    %993 = vmatprep.subr.mxu0 0.0
    %994 = vmatpush1.xpose.msra.mxu0 0.0
    %995 = vmatprep.subr.mxu0 0.0
    %996 = vmatpush1.xpose.msra.mxu0 0.0
    %997 = vmatprep.subr.mxu0 0.0
    %998 = vmatpush1.xpose.msra.mxu0 0.0
    %999 = vmatprep.subr.mxu0 0.0
    %1000 = vmatpush1.xpose.msra.mxu0 0.0
    %1001 = vmatprep.subr.mxu0 0.0
    %1002 = vmatpush1.xpose.msra.mxu0 0.0
    %1003 = vmatprep.subr.mxu0 0.0
    %1004 = vmatpush1.xpose.msra.mxu0 0.0
    %1005 = vmatprep.subr.mxu0 0.0
    %1006 = vmatpush1.xpose.msra.mxu0 0.0
    %1007 = vmatprep.subr.mxu0 0.0
    %1008 = vmatpush1.xpose.msra.mxu0 0.0
    %1009 = vmatprep.subr.mxu0 0.0
    %1010 = vmatpush1.xpose.msra.mxu0 0.0
    %1011 = vmatprep.subr.mxu0 0.0
    %1012 = vmatpush1.xpose.msra.mxu0 0.0
    %1013 = vmatprep.subr.mxu0 0.0
    %1014 = vmatpush1.xpose.msra.mxu0 0.0
    %1015 = vmatprep.mubr.f32.mxu0 0.0
    %1016 = vmatmul.mubr.f32.gmra.mrb[0].mxu0 %v946
    %v1017 = vpop.f32.mrb[0].mxu0
    %v1018 = vadd.f32 %v715, %v1017
    %v1019 = vpop.f32.mrb[0].mxu0
    %1020 = vdwg.mxu0
    %v1021 = vsel %vm716, %v790, -inf
    %1022 = vmax.xlane.f32.xlu0 %v1021
    %v1023 = vpop.xlane.xlu0 %1022
    %v1024 = vsel %vm716, %v866, -inf
    %1025 = vmax.xlane.f32.xlu0 %v1024
    %v1026 = vpop.xlane.xlu0 %1025
    %v1027 = vsel %vm716, %v942, -inf
    %1028 = vmax.xlane.f32.xlu0 %v1027
    %v1029 = vpop.xlane.xlu0 %1028
    %v1030 = vsel %vm716, %v1018, -inf
    %1031 = vmax.xlane.f32.xlu0 %v1030
    %v1032 = vpop.xlane.xlu0 %1031
    %v1033 = vsub.f32 %v790, %v1023
    %v1034 = vsub.f32 %v866, %v1026
    %v1035 = vsub.f32 %v942, %v1029
    %v1036 = vsub.f32 %v1018, %v1032
    %v1037 = vmul.f32 %v1033, 1.442695
    %v1038 = vpow.pop %v1037
    %v1039 = vmul.f32 %v1034, 1.442695
    %v1040 = vpow.pop %v1039
    %v1041 = vmul.f32 %v1035, 1.442695
    %v1042 = vpow.pop %v1041
    %v1043 = vmul.f32 %v1036, 1.442695
    %v1044 = vpow.pop %v1043
    %v1045 = vsel %vm716, %v1038, 0.0
    %1046 = vadd.xlane.f32.xlu0 %v1045
    %v1047 = vpop.xlane.xlu0 %1046
    %v1048 = vsel %vm716, %v1040, 0.0
    %1049 = vadd.xlane.f32.xlu0 %v1048
    %v1050 = vpop.xlane.xlu0 %1049
    %v1051 = vsel %vm716, %v1042, 0.0
    %1052 = vadd.xlane.f32.xlu0 %v1051
    %v1053 = vpop.xlane.xlu0 %1052
    %v1054 = vsel %vm716, %v1044, 0.0
    %1055 = vadd.xlane.f32.xlu0 %v1054
    %v1056 = vpop.xlane.xlu0 %1055
    %v1057 = vrcp.pop %v1047
    %v1058 = vrcp.pop %v1050
    %v1059 = vrcp.pop %v1053
    %v1060 = vrcp.pop %v1056
    %v1061 = vmul.f32 %v1038, %v1057
    %v1062 = vmul.f32 %v1040, %v1058
    %v1063 = vmul.f32 %v1042, %v1059
    %v1064 = vmul.f32 %v1044, %v1060
    %v1066 = vsel %vm716, %v1061, 0
    %1068 = vmatprep.subr.mxu0 0.0
    %1069 = vmatpush1.msra.mxu0 %v701
    %1070 = vmatprep.subr.mxu0 0.0
    %1071 = vmatpush1.msra.mxu0 0.0
    %1072 = vmatprep.subr.mxu0 0.0
    %1073 = vmatpush1.msra.mxu0 0.0
    %1074 = vmatprep.subr.mxu0 0.0
    %1075 = vmatpush1.msra.mxu0 0.0
    %1076 = vmatprep.subr.mxu0 0.0
    %1077 = vmatpush1.msra.mxu0 0.0
    %1078 = vmatprep.subr.mxu0 0.0
    %1079 = vmatpush1.msra.mxu0 0.0
    %1080 = vmatprep.subr.mxu0 0.0
    %1081 = vmatpush1.msra.mxu0 0.0
    %1082 = vmatprep.subr.mxu0 0.0
    %1083 = vmatpush1.msra.mxu0 0.0
    %1084 = vmatprep.subr.mxu0 0.0
    %1085 = vmatpush1.msra.mxu0 0.0
    %1086 = vmatprep.subr.mxu0 0.0
    %1087 = vmatpush1.msra.mxu0 0.0
    %1088 = vmatprep.subr.mxu0 0.0
    %1089 = vmatpush1.msra.mxu0 0.0
    %1090 = vmatprep.subr.mxu0 0.0
    %1091 = vmatpush1.msra.mxu0 0.0
    %1092 = vmatprep.subr.mxu0 0.0
    %1093 = vmatpush1.msra.mxu0 0.0
    %1094 = vmatprep.subr.mxu0 0.0
    %1095 = vmatpush1.msra.mxu0 0.0
    %1096 = vmatprep.subr.mxu0 0.0
    %1097 = vmatpush1.msra.mxu0 0.0
    %1098 = vmatprep.subr.mxu0 0.0
    %1099 = vmatpush1.msra.mxu0 0.0
    %1100 = vmatprep.subr.mxu0 0.0
    %1101 = vmatpush1.msra.mxu0 0.0
    %1102 = vmatprep.subr.mxu0 0.0
    %1103 = vmatpush1.msra.mxu0 0.0
    %1104 = vmatprep.subr.mxu0 0.0
    %1105 = vmatpush1.msra.mxu0 0.0
    %1106 = vmatprep.subr.mxu0 0.0
    %1107 = vmatpush1.msra.mxu0 0.0
    %1108 = vmatprep.subr.mxu0 0.0
    %1109 = vmatpush1.msra.mxu0 0.0
    %1110 = vmatprep.subr.mxu0 0.0
    %1111 = vmatpush1.msra.mxu0 0.0
    %1112 = vmatprep.subr.mxu0 0.0
    %1113 = vmatpush1.msra.mxu0 0.0
    %1114 = vmatprep.subr.mxu0 0.0
    %1115 = vmatpush1.msra.mxu0 0.0
    %1116 = vmatprep.subr.mxu0 0.0
    %1117 = vmatpush1.msra.mxu0 0.0
    %1118 = vmatprep.subr.mxu0 0.0
    %1119 = vmatpush1.msra.mxu0 0.0
    %1120 = vmatprep.subr.mxu0 0.0
    %1121 = vmatpush1.msra.mxu0 0.0
    %1122 = vmatprep.subr.mxu0 0.0
    %1123 = vmatpush1.msra.mxu0 0.0
    %1124 = vmatprep.subr.mxu0 0.0
    %1125 = vmatpush1.msra.mxu0 0.0
    %1126 = vmatprep.subr.mxu0 0.0
    %1127 = vmatpush1.msra.mxu0 0.0
    %1128 = vmatprep.subr.mxu0 0.0
    %1129 = vmatpush1.msra.mxu0 0.0
    %1130 = vmatprep.subr.mxu0 0.0
    %1131 = vmatpush1.msra.mxu0 0.0
    %1132 = vmatprep.mubr.f32.mxu0 0.0
    %1133 = vmatmul.mubr.f32.gmra.mrb[0].mxu0 %v1066
    %v1134 = vpop.f32.mrb[0].mxu0
    %v1135 = vadd.f32 0.0, %v1134
    %v1136 = vpop.f32.mrb[0].mxu0
    %1137 = vdwg.mxu0
    %v1139 = vsel %vm716, %v1062, 0
    %1141 = vmatprep.subr.mxu0 0.0
    %1142 = vmatpush1.msra.mxu0 %v702
    %1143 = vmatprep.subr.mxu0 0.0
    %1144 = vmatpush1.msra.mxu0 0.0
    %1145 = vmatprep.subr.mxu0 0.0
    %1146 = vmatpush1.msra.mxu0 0.0
    %1147 = vmatprep.subr.mxu0 0.0
    %1148 = vmatpush1.msra.mxu0 0.0
    %1149 = vmatprep.subr.mxu0 0.0
    %1150 = vmatpush1.msra.mxu0 0.0
    %1151 = vmatprep.subr.mxu0 0.0
    %1152 = vmatpush1.msra.mxu0 0.0
    %1153 = vmatprep.subr.mxu0 0.0
    %1154 = vmatpush1.msra.mxu0 0.0
    %1155 = vmatprep.subr.mxu0 0.0
    %1156 = vmatpush1.msra.mxu0 0.0
    %1157 = vmatprep.subr.mxu0 0.0
    %1158 = vmatpush1.msra.mxu0 0.0
    %1159 = vmatprep.subr.mxu0 0.0
    %1160 = vmatpush1.msra.mxu0 0.0
    %1161 = vmatprep.subr.mxu0 0.0
    %1162 = vmatpush1.msra.mxu0 0.0
    %1163 = vmatprep.subr.mxu0 0.0
    %1164 = vmatpush1.msra.mxu0 0.0
    %1165 = vmatprep.subr.mxu0 0.0
    %1166 = vmatpush1.msra.mxu0 0.0
    %1167 = vmatprep.subr.mxu0 0.0
    %1168 = vmatpush1.msra.mxu0 0.0
    %1169 = vmatprep.subr.mxu0 0.0
    %1170 = vmatpush1.msra.mxu0 0.0
    %1171 = vmatprep.subr.mxu0 0.0
    %1172 = vmatpush1.msra.mxu0 0.0
    %1173 = vmatprep.subr.mxu0 0.0
    %1174 = vmatpush1.msra.mxu0 0.0
    %1175 = vmatprep.subr.mxu0 0.0
    %1176 = vmatpush1.msra.mxu0 0.0
    %1177 = vmatprep.subr.mxu0 0.0
    %1178 = vmatpush1.msra.mxu0 0.0
    %1179 = vmatprep.subr.mxu0 0.0
    %1180 = vmatpush1.msra.mxu0 0.0
    %1181 = vmatprep.subr.mxu0 0.0
    %1182 = vmatpush1.msra.mxu0 0.0
    %1183 = vmatprep.subr.mxu0 0.0
    %1184 = vmatpush1.msra.mxu0 0.0
    %1185 = vmatprep.subr.mxu0 0.0
    %1186 = vmatpush1.msra.mxu0 0.0
    %1187 = vmatprep.subr.mxu0 0.0
    %1188 = vmatpush1.msra.mxu0 0.0
    %1189 = vmatprep.subr.mxu0 0.0
    %1190 = vmatpush1.msra.mxu0 0.0
    %1191 = vmatprep.subr.mxu0 0.0
    %1192 = vmatpush1.msra.mxu0 0.0
    %1193 = vmatprep.subr.mxu0 0.0
    %1194 = vmatpush1.msra.mxu0 0.0
    %1195 = vmatprep.subr.mxu0 0.0
    %1196 = vmatpush1.msra.mxu0 0.0
    %1197 = vmatprep.subr.mxu0 0.0
    %1198 = vmatpush1.msra.mxu0 0.0
    %1199 = vmatprep.subr.mxu0 0.0
    %1200 = vmatpush1.msra.mxu0 0.0
    %1201 = vmatprep.subr.mxu0 0.0
    %1202 = vmatpush1.msra.mxu0 0.0
    %1203 = vmatprep.subr.mxu0 0.0
    %1204 = vmatpush1.msra.mxu0 0.0
    %1205 = vmatprep.mubr.f32.mxu0 0.0
    %1206 = vmatmul.mubr.f32.gmra.mrb[0].mxu0 %v1139
    %v1207 = vpop.f32.mrb[0].mxu0
    %v1208 = vadd.f32 0.0, %v1207
    %v1209 = vpop.f32.mrb[0].mxu0
    %1210 = vdwg.mxu0
    %v1212 = vsel %vm716, %v1063, 0
    %1214 = vmatprep.subr.mxu0 0.0
    %1215 = vmatpush1.msra.mxu0 %v703
    %1216 = vmatprep.subr.mxu0 0.0
    %1217 = vmatpush1.msra.mxu0 0.0
    %1218 = vmatprep.subr.mxu0 0.0
    %1219 = vmatpush1.msra.mxu0 0.0
    %1220 = vmatprep.subr.mxu0 0.0
    %1221 = vmatpush1.msra.mxu0 0.0
    %1222 = vmatprep.subr.mxu0 0.0
    %1223 = vmatpush1.msra.mxu0 0.0
    %1224 = vmatprep.subr.mxu0 0.0
    %1225 = vmatpush1.msra.mxu0 0.0
    %1226 = vmatprep.subr.mxu0 0.0
    %1227 = vmatpush1.msra.mxu0 0.0
    %1228 = vmatprep.subr.mxu0 0.0
    %1229 = vmatpush1.msra.mxu0 0.0
    %1230 = vmatprep.subr.mxu0 0.0
    %1231 = vmatpush1.msra.mxu0 0.0
    %1232 = vmatprep.subr.mxu0 0.0
    %1233 = vmatpush1.msra.mxu0 0.0
    %1234 = vmatprep.subr.mxu0 0.0
    %1235 = vmatpush1.msra.mxu0 0.0
    %1236 = vmatprep.subr.mxu0 0.0
    %1237 = vmatpush1.msra.mxu0 0.0
    %1238 = vmatprep.subr.mxu0 0.0
    %1239 = vmatpush1.msra.mxu0 0.0
    %1240 = vmatprep.subr.mxu0 0.0
    %1241 = vmatpush1.msra.mxu0 0.0
    %1242 = vmatprep.subr.mxu0 0.0
    %1243 = vmatpush1.msra.mxu0 0.0
    %1244 = vmatprep.subr.mxu0 0.0
    %1245 = vmatpush1.msra.mxu0 0.0
    %1246 = vmatprep.subr.mxu0 0.0
    %1247 = vmatpush1.msra.mxu0 0.0
    %1248 = vmatprep.subr.mxu0 0.0
    %1249 = vmatpush1.msra.mxu0 0.0
    %1250 = vmatprep.subr.mxu0 0.0
    %1251 = vmatpush1.msra.mxu0 0.0
    %1252 = vmatprep.subr.mxu0 0.0
    %1253 = vmatpush1.msra.mxu0 0.0
    %1254 = vmatprep.subr.mxu0 0.0
    %1255 = vmatpush1.msra.mxu0 0.0
    %1256 = vmatprep.subr.mxu0 0.0
    %1257 = vmatpush1.msra.mxu0 0.0
    %1258 = vmatprep.subr.mxu0 0.0
    %1259 = vmatpush1.msra.mxu0 0.0
    %1260 = vmatprep.subr.mxu0 0.0
    %1261 = vmatpush1.msra.mxu0 0.0
    %1262 = vmatprep.subr.mxu0 0.0
    %1263 = vmatpush1.msra.mxu0 0.0
    %1264 = vmatprep.subr.mxu0 0.0
    %1265 = vmatpush1.msra.mxu0 0.0
    %1266 = vmatprep.subr.mxu0 0.0
    %1267 = vmatpush1.msra.mxu0 0.0
    %1268 = vmatprep.subr.mxu0 0.0
    %1269 = vmatpush1.msra.mxu0 0.0
    %1270 = vmatprep.subr.mxu0 0.0
    %1271 = vmatpush1.msra.mxu0 0.0
    %1272 = vmatprep.subr.mxu0 0.0
    %1273 = vmatpush1.msra.mxu0 0.0
    %1274 = vmatprep.subr.mxu0 0.0
    %1275 = vmatpush1.msra.mxu0 0.0
    %1276 = vmatprep.subr.mxu0 0.0
    %1277 = vmatpush1.msra.mxu0 0.0
    %1278 = vmatprep.mubr.f32.mxu0 0.0
    %1279 = vmatmul.mubr.f32.gmra.mrb[0].mxu0 %v1212
    %v1280 = vpop.f32.mrb[0].mxu0
    %v1281 = vadd.f32 0.0, %v1280
    %v1282 = vpop.f32.mrb[0].mxu0
    %1283 = vdwg.mxu0
    %v1285 = vsel %vm716, %v1064, 0
    %1287 = vmatprep.subr.mxu0 0.0
    %1288 = vmatpush1.msra.mxu0 %v704
    %1289 = vmatprep.subr.mxu0 0.0
    %1290 = vmatpush1.msra.mxu0 0.0
    %1291 = vmatprep.subr.mxu0 0.0
    %1292 = vmatpush1.msra.mxu0 0.0
    %1293 = vmatprep.subr.mxu0 0.0
    %1294 = vmatpush1.msra.mxu0 0.0
    %1295 = vmatprep.subr.mxu0 0.0
    %1296 = vmatpush1.msra.mxu0 0.0
    %1297 = vmatprep.subr.mxu0 0.0
    %1298 = vmatpush1.msra.mxu0 0.0
    %1299 = vmatprep.subr.mxu0 0.0
    %1300 = vmatpush1.msra.mxu0 0.0
    %1301 = vmatprep.subr.mxu0 0.0
    %1302 = vmatpush1.msra.mxu0 0.0
    %1303 = vmatprep.subr.mxu0 0.0
    %1304 = vmatpush1.msra.mxu0 0.0
    %1305 = vmatprep.subr.mxu0 0.0
    %1306 = vmatpush1.msra.mxu0 0.0
    %1307 = vmatprep.subr.mxu0 0.0
    %1308 = vmatpush1.msra.mxu0 0.0
    %1309 = vmatprep.subr.mxu0 0.0
    %1310 = vmatpush1.msra.mxu0 0.0
    %1311 = vmatprep.subr.mxu0 0.0
    %1312 = vmatpush1.msra.mxu0 0.0
    %1313 = vmatprep.subr.mxu0 0.0
    %1314 = vmatpush1.msra.mxu0 0.0
    %1315 = vmatprep.subr.mxu0 0.0
    %1316 = vmatpush1.msra.mxu0 0.0
    %1317 = vmatprep.subr.mxu0 0.0
    %1318 = vmatpush1.msra.mxu0 0.0
    %1319 = vmatprep.subr.mxu0 0.0
    %1320 = vmatpush1.msra.mxu0 0.0
    %1321 = vmatprep.subr.mxu0 0.0
    %1322 = vmatpush1.msra.mxu0 0.0
    %1323 = vmatprep.subr.mxu0 0.0
    %1324 = vmatpush1.msra.mxu0 0.0
    %1325 = vmatprep.subr.mxu0 0.0
    %1326 = vmatpush1.msra.mxu0 0.0
    %1327 = vmatprep.subr.mxu0 0.0
    %1328 = vmatpush1.msra.mxu0 0.0
    %1329 = vmatprep.subr.mxu0 0.0
    %1330 = vmatpush1.msra.mxu0 0.0
    %1331 = vmatprep.subr.mxu0 0.0
    %1332 = vmatpush1.msra.mxu0 0.0
    %1333 = vmatprep.subr.mxu0 0.0
    %1334 = vmatpush1.msra.mxu0 0.0
    %1335 = vmatprep.subr.mxu0 0.0
    %1336 = vmatpush1.msra.mxu0 0.0
    %1337 = vmatprep.subr.mxu0 0.0
    %1338 = vmatpush1.msra.mxu0 0.0
    %1339 = vmatprep.subr.mxu0 0.0
    %1340 = vmatpush1.msra.mxu0 0.0
    %1341 = vmatprep.subr.mxu0 0.0
    %1342 = vmatpush1.msra.mxu0 0.0
    %1343 = vmatprep.subr.mxu0 0.0
    %1344 = vmatpush1.msra.mxu0 0.0
    %1345 = vmatprep.subr.mxu0 0.0
    %1346 = vmatpush1.msra.mxu0 0.0
    %1347 = vmatprep.subr.mxu0 0.0
    %1348 = vmatpush1.msra.mxu0 0.0
    %1349 = vmatprep.subr.mxu0 0.0
    %1350 = vmatpush1.msra.mxu0 0.0
    %1351 = vmatprep.mubr.f32.mxu0 0.0
    %1352 = vmatmul.mubr.f32.gmra.mrb[0].mxu0 %v1285
    %v1353 = vpop.f32.mrb[0].mxu0
    %v1354 = vadd.f32 0.0, %v1353
    %v1355 = vpop.f32.mrb[0].mxu0
    %1356 = vdwg.mxu0
    %v1357 = vld [vmem:[#allocation10] sm:$0xff]
    %v1358 = vld [vmem:[#allocation10 + $0x8] sm:$0xff]
    %v1360 = vsel %vm716, %v1208, 0
    %1362 = vmatprep.subr.mxu0 0.0
    %1363 = vmatpush1.msra.mxu0 %v1358
    %1364 = vmatprep.subr.mxu0 0.0
    %1365 = vmatpush1.msra.mxu0 0.0
    %1366 = vmatprep.subr.mxu0 0.0
    %1367 = vmatpush1.msra.mxu0 0.0
    %1368 = vmatprep.subr.mxu0 0.0
    %1369 = vmatpush1.msra.mxu0 0.0
    %1370 = vmatprep.subr.mxu0 0.0
    %1371 = vmatpush1.msra.mxu0 0.0
    %1372 = vmatprep.subr.mxu0 0.0
    %1373 = vmatpush1.msra.mxu0 0.0
    %1374 = vmatprep.subr.mxu0 0.0
    %1375 = vmatpush1.msra.mxu0 0.0
    %1376 = vmatprep.subr.mxu0 0.0
    %1377 = vmatpush1.msra.mxu0 0.0
    %1378 = vmatprep.subr.mxu0 0.0
    %1379 = vmatpush1.msra.mxu0 0.0
    %1380 = vmatprep.subr.mxu0 0.0
    %1381 = vmatpush1.msra.mxu0 0.0
    %1382 = vmatprep.subr.mxu0 0.0
    %1383 = vmatpush1.msra.mxu0 0.0
    %1384 = vmatprep.subr.mxu0 0.0
    %1385 = vmatpush1.msra.mxu0 0.0
    %1386 = vmatprep.subr.mxu0 0.0
    %1387 = vmatpush1.msra.mxu0 0.0
    %1388 = vmatprep.subr.mxu0 0.0
    %1389 = vmatpush1.msra.mxu0 0.0
    %1390 = vmatprep.subr.mxu0 0.0
    %1391 = vmatpush1.msra.mxu0 0.0
    %1392 = vmatprep.subr.mxu0 0.0
    %1393 = vmatpush1.msra.mxu0 0.0
    %1394 = vmatprep.subr.mxu0 0.0
    %1395 = vmatpush1.msra.mxu0 0.0
    %1396 = vmatprep.subr.mxu0 0.0
    %1397 = vmatpush1.msra.mxu0 0.0
    %1398 = vmatprep.subr.mxu0 0.0
    %1399 = vmatpush1.msra.mxu0 0.0
    %1400 = vmatprep.subr.mxu0 0.0
    %1401 = vmatpush1.msra.mxu0 0.0
    %1402 = vmatprep.subr.mxu0 0.0
    %1403 = vmatpush1.msra.mxu0 0.0
    %1404 = vmatprep.subr.mxu0 0.0
    %1405 = vmatpush1.msra.mxu0 0.0
    %1406 = vmatprep.subr.mxu0 0.0
    %1407 = vmatpush1.msra.mxu0 0.0
    %1408 = vmatprep.subr.mxu0 0.0
    %1409 = vmatpush1.msra.mxu0 0.0
    %1410 = vmatprep.subr.mxu0 0.0
    %1411 = vmatpush1.msra.mxu0 0.0
    %1412 = vmatprep.subr.mxu0 0.0
    %1413 = vmatpush1.msra.mxu0 0.0
    %1414 = vmatprep.subr.mxu0 0.0
    %1415 = vmatpush1.msra.mxu0 0.0
    %1416 = vmatprep.subr.mxu0 0.0
    %1417 = vmatpush1.msra.mxu0 0.0
    %1418 = vmatprep.subr.mxu0 0.0
    %1419 = vmatpush1.msra.mxu0 0.0
    %1420 = vmatprep.subr.mxu0 0.0
    %1421 = vmatpush1.msra.mxu0 0.0
    %1422 = vmatprep.subr.mxu0 0.0
    %1423 = vmatpush1.msra.mxu0 0.0
    %1424 = vmatprep.subr.mxu0 0.0
    %1425 = vmatpush1.msra.mxu0 0.0
    %1426 = vmatprep.mubr.f32.mxu0 0.0
    %1427 = vmatmul.mubr.f32.gmra.mrb[0].mxu0 %v1360
    %v1428 = vpop.f32.mrb[0].mxu0
    %v1429 = vadd.f32 0.0, %v1428
    %v1430 = vpop.f32.mrb[0].mxu0
    %1431 = vdwg.mxu0
    %v1433 = vsel %vm716, %v1135, 0
    %1435 = vmatprep.subr.mxu0 0.0
    %1436 = vmatpush1.msra.mxu0 %v1357
    %1437 = vmatprep.subr.mxu0 0.0
    %1438 = vmatpush1.msra.mxu0 0.0
    %1439 = vmatprep.subr.mxu0 0.0
    %1440 = vmatpush1.msra.mxu0 0.0
    %1441 = vmatprep.subr.mxu0 0.0
    %1442 = vmatpush1.msra.mxu0 0.0
    %1443 = vmatprep.subr.mxu0 0.0
    %1444 = vmatpush1.msra.mxu0 0.0
    %1445 = vmatprep.subr.mxu0 0.0
    %1446 = vmatpush1.msra.mxu0 0.0
    %1447 = vmatprep.subr.mxu0 0.0
    %1448 = vmatpush1.msra.mxu0 0.0
    %1449 = vmatprep.subr.mxu0 0.0
    %1450 = vmatpush1.msra.mxu0 0.0
    %1451 = vmatprep.subr.mxu0 0.0
    %1452 = vmatpush1.msra.mxu0 0.0
    %1453 = vmatprep.subr.mxu0 0.0
    %1454 = vmatpush1.msra.mxu0 0.0
    %1455 = vmatprep.subr.mxu0 0.0
    %1456 = vmatpush1.msra.mxu0 0.0
    %1457 = vmatprep.subr.mxu0 0.0
    %1458 = vmatpush1.msra.mxu0 0.0
    %1459 = vmatprep.subr.mxu0 0.0
    %1460 = vmatpush1.msra.mxu0 0.0
    %1461 = vmatprep.subr.mxu0 0.0
    %1462 = vmatpush1.msra.mxu0 0.0
    %1463 = vmatprep.subr.mxu0 0.0
    %1464 = vmatpush1.msra.mxu0 0.0
    %1465 = vmatprep.subr.mxu0 0.0
    %1466 = vmatpush1.msra.mxu0 0.0
    %1467 = vmatprep.subr.mxu0 0.0
    %1468 = vmatpush1.msra.mxu0 0.0
    %1469 = vmatprep.subr.mxu0 0.0
    %1470 = vmatpush1.msra.mxu0 0.0
    %1471 = vmatprep.subr.mxu0 0.0
    %1472 = vmatpush1.msra.mxu0 0.0
    %1473 = vmatprep.subr.mxu0 0.0
    %1474 = vmatpush1.msra.mxu0 0.0
    %1475 = vmatprep.subr.mxu0 0.0
    %1476 = vmatpush1.msra.mxu0 0.0
    %1477 = vmatprep.subr.mxu0 0.0
    %1478 = vmatpush1.msra.mxu0 0.0
    %1479 = vmatprep.subr.mxu0 0.0
    %1480 = vmatpush1.msra.mxu0 0.0
    %1481 = vmatprep.subr.mxu0 0.0
    %1482 = vmatpush1.msra.mxu0 0.0
    %1483 = vmatprep.subr.mxu0 0.0
    %1484 = vmatpush1.msra.mxu0 0.0
    %1485 = vmatprep.subr.mxu0 0.0
    %1486 = vmatpush1.msra.mxu0 0.0
    %1487 = vmatprep.subr.mxu0 0.0
    %1488 = vmatpush1.msra.mxu0 0.0
    %1489 = vmatprep.subr.mxu0 0.0
    %1490 = vmatpush1.msra.mxu0 0.0
    %1491 = vmatprep.subr.mxu0 0.0
    %1492 = vmatpush1.msra.mxu0 0.0
    %1493 = vmatprep.subr.mxu0 0.0
    %1494 = vmatpush1.msra.mxu0 0.0
    %1495 = vmatprep.subr.mxu0 0.0
    %1496 = vmatpush1.msra.mxu0 0.0
    %1497 = vmatprep.subr.mxu0 0.0
    %1498 = vmatpush1.msra.mxu0 0.0
    %1499 = vmatprep.mubr.f32.mxu0 0.0
    %1500 = vmatmul.mubr.f32.gmra.mrb[0].mxu0 %v1433
    %v1501 = vpop.f32.mrb[0].mxu0
    %v1502 = vadd.f32 %v1429, %v1501
    %v1503 = vpop.f32.mrb[0].mxu0
    %1504 = vdwg.mxu0
    %v1505 = vld [vmem:[#allocation10 + $0x10] sm:$0xff]
    %v1507 = vsel %vm716, %v1281, 0
    %1509 = vmatprep.subr.mxu0 0.0
    %1510 = vmatpush1.msra.mxu0 %v1505
    %1511 = vmatprep.subr.mxu0 0.0
    %1512 = vmatpush1.msra.mxu0 0.0
    %1513 = vmatprep.subr.mxu0 0.0
    %1514 = vmatpush1.msra.mxu0 0.0
    %1515 = vmatprep.subr.mxu0 0.0
    %1516 = vmatpush1.msra.mxu0 0.0
    %1517 = vmatprep.subr.mxu0 0.0
    %1518 = vmatpush1.msra.mxu0 0.0
    %1519 = vmatprep.subr.mxu0 0.0
    %1520 = vmatpush1.msra.mxu0 0.0
    %1521 = vmatprep.subr.mxu0 0.0
    %1522 = vmatpush1.msra.mxu0 0.0
    %1523 = vmatprep.subr.mxu0 0.0
    %1524 = vmatpush1.msra.mxu0 0.0
    %1525 = vmatprep.subr.mxu0 0.0
    %1526 = vmatpush1.msra.mxu0 0.0
    %1527 = vmatprep.subr.mxu0 0.0
    %1528 = vmatpush1.msra.mxu0 0.0
    %1529 = vmatprep.subr.mxu0 0.0
    %1530 = vmatpush1.msra.mxu0 0.0
    %1531 = vmatprep.subr.mxu0 0.0
    %1532 = vmatpush1.msra.mxu0 0.0
    %1533 = vmatprep.subr.mxu0 0.0
    %1534 = vmatpush1.msra.mxu0 0.0
    %1535 = vmatprep.subr.mxu0 0.0
    %1536 = vmatpush1.msra.mxu0 0.0
    %1537 = vmatprep.subr.mxu0 0.0
    %1538 = vmatpush1.msra.mxu0 0.0
    %1539 = vmatprep.subr.mxu0 0.0
    %1540 = vmatpush1.msra.mxu0 0.0
    %1541 = vmatprep.subr.mxu0 0.0
    %1542 = vmatpush1.msra.mxu0 0.0
    %1543 = vmatprep.subr.mxu0 0.0
    %1544 = vmatpush1.msra.mxu0 0.0
    %1545 = vmatprep.subr.mxu0 0.0
    %1546 = vmatpush1.msra.mxu0 0.0
    %1547 = vmatprep.subr.mxu0 0.0
    %1548 = vmatpush1.msra.mxu0 0.0
    %1549 = vmatprep.subr.mxu0 0.0
    %1550 = vmatpush1.msra.mxu0 0.0
    %1551 = vmatprep.subr.mxu0 0.0
    %1552 = vmatpush1.msra.mxu0 0.0
    %1553 = vmatprep.subr.mxu0 0.0
    %1554 = vmatpush1.msra.mxu0 0.0
    %1555 = vmatprep.subr.mxu0 0.0
    %1556 = vmatpush1.msra.mxu0 0.0
    %1557 = vmatprep.subr.mxu0 0.0
    %1558 = vmatpush1.msra.mxu0 0.0
    %1559 = vmatprep.subr.mxu0 0.0
    %1560 = vmatpush1.msra.mxu0 0.0
    %1561 = vmatprep.subr.mxu0 0.0
    %1562 = vmatpush1.msra.mxu0 0.0
    %1563 = vmatprep.subr.mxu0 0.0
    %1564 = vmatpush1.msra.mxu0 0.0
    %1565 = vmatprep.subr.mxu0 0.0
    %1566 = vmatpush1.msra.mxu0 0.0
    %1567 = vmatprep.subr.mxu0 0.0
    %1568 = vmatpush1.msra.mxu0 0.0
    %1569 = vmatprep.subr.mxu0 0.0
    %1570 = vmatpush1.msra.mxu0 0.0
    %1571 = vmatprep.subr.mxu0 0.0
    %1572 = vmatpush1.msra.mxu0 0.0
    %1573 = vmatprep.mubr.f32.mxu0 0.0
    %1574 = vmatmul.mubr.f32.gmra.mrb[0].mxu0 %v1507
    %v1575 = vpop.f32.mrb[0].mxu0
    %v1576 = vadd.f32 0.0, %v1575
    %v1577 = vpop.f32.mrb[0].mxu0
    %1578 = vdwg.mxu0
    %v1579 = vadd.f32 %v1502, %v1576
    %v1580 = vld [vmem:[#allocation10 + $0x18] sm:$0xff]
    %v1582 = vsel %vm716, %v1354, 0
    %1584 = vmatprep.subr.mxu0 0.0
    %1585 = vmatpush1.msra.mxu0 %v1580
    %1586 = vmatprep.subr.mxu0 0.0
    %1587 = vmatpush1.msra.mxu0 0.0
    %1588 = vmatprep.subr.mxu0 0.0
    %1589 = vmatpush1.msra.mxu0 0.0
    %1590 = vmatprep.subr.mxu0 0.0
    %1591 = vmatpush1.msra.mxu0 0.0
    %1592 = vmatprep.subr.mxu0 0.0
    %1593 = vmatpush1.msra.mxu0 0.0
    %1594 = vmatprep.subr.mxu0 0.0
    %1595 = vmatpush1.msra.mxu0 0.0
    %1596 = vmatprep.subr.mxu0 0.0
    %1597 = vmatpush1.msra.mxu0 0.0
    %1598 = vmatprep.subr.mxu0 0.0
    %1599 = vmatpush1.msra.mxu0 0.0
    %1600 = vmatprep.subr.mxu0 0.0
    %1601 = vmatpush1.msra.mxu0 0.0
    %1602 = vmatprep.subr.mxu0 0.0
    %1603 = vmatpush1.msra.mxu0 0.0
    %1604 = vmatprep.subr.mxu0 0.0
    %1605 = vmatpush1.msra.mxu0 0.0
    %1606 = vmatprep.subr.mxu0 0.0
    %1607 = vmatpush1.msra.mxu0 0.0
    %1608 = vmatprep.subr.mxu0 0.0
    %1609 = vmatpush1.msra.mxu0 0.0
    %1610 = vmatprep.subr.mxu0 0.0
    %1611 = vmatpush1.msra.mxu0 0.0
    %1612 = vmatprep.subr.mxu0 0.0
    %1613 = vmatpush1.msra.mxu0 0.0
    %1614 = vmatprep.subr.mxu0 0.0
    %1615 = vmatpush1.msra.mxu0 0.0
    %1616 = vmatprep.subr.mxu0 0.0
    %1617 = vmatpush1.msra.mxu0 0.0
    %1618 = vmatprep.subr.mxu0 0.0
    %1619 = vmatpush1.msra.mxu0 0.0
    %1620 = vmatprep.subr.mxu0 0.0
    %1621 = vmatpush1.msra.mxu0 0.0
    %1622 = vmatprep.subr.mxu0 0.0
    %1623 = vmatpush1.msra.mxu0 0.0
    %1624 = vmatprep.subr.mxu0 0.0
    %1625 = vmatpush1.msra.mxu0 0.0
    %1626 = vmatprep.subr.mxu0 0.0
    %1627 = vmatpush1.msra.mxu0 0.0
    %1628 = vmatprep.subr.mxu0 0.0
    %1629 = vmatpush1.msra.mxu0 0.0
    %1630 = vmatprep.subr.mxu0 0.0
    %1631 = vmatpush1.msra.mxu0 0.0
    %1632 = vmatprep.subr.mxu0 0.0
    %1633 = vmatpush1.msra.mxu0 0.0
    %1634 = vmatprep.subr.mxu0 0.0
    %1635 = vmatpush1.msra.mxu0 0.0
    %1636 = vmatprep.subr.mxu0 0.0
    %1637 = vmatpush1.msra.mxu0 0.0
    %1638 = vmatprep.subr.mxu0 0.0
    %1639 = vmatpush1.msra.mxu0 0.0
    %1640 = vmatprep.subr.mxu0 0.0
    %1641 = vmatpush1.msra.mxu0 0.0
    %1642 = vmatprep.subr.mxu0 0.0
    %1643 = vmatpush1.msra.mxu0 0.0
    %1644 = vmatprep.subr.mxu0 0.0
    %1645 = vmatpush1.msra.mxu0 0.0
    %1646 = vmatprep.subr.mxu0 0.0
    %1647 = vmatpush1.msra.mxu0 0.0
    %1648 = vmatprep.mubr.f32.mxu0 0.0
    %1649 = vmatmul.mubr.f32.gmra.mrb[0].mxu0 %v1582
    %v1650 = vpop.f32.mrb[0].mxu0
    %v1651 = vadd.f32 0.0, %v1650
    %v1652 = vpop.f32.mrb[0].mxu0
    %1653 = vdwg.mxu0
    %v1654 = vadd.f32 %v1579, %v1651
    %v1655 = vld [vmem:[%s7] sm:$0x1]
    %v1657 = vlaneseq
    %v1658 = vshrl.u32 %v1657, 7
    %v1659 = vsub.s32 0, %v1658
    %v1660 = vrot.slane %v1655, %v1659
    %v1662 = vadd.f32 %v1654, %v1660
    %1663 = vst.msk [vmem:[#allocation11] sm:$0xff] %vm107, %v1662
    // Predicated region
    $region54: #{tpu_custom_call.1} parent=1 // pred_check
      _
    $region55: #{tpu_custom_call.1} parent=1 // pred_check_branch
      %1665 = sbr.rel (0) target = $region57
    $region56: #{tpu_custom_call.1} parent=1 // pred_region
      %s1667 = ssub.s32 128, 128
      %1668 = vsyncadd [#allocation4], %s1667
      %s1670 = sshll.u32 [#allocation11], 4
      %s1671 = int_to_ptr.vmem [resolvable:$true] %s1670
      %1673 = dma.vmem_to_hbm [thread:$0]  %s1671, 128, %s8, [#allocation4]
    $region57: #{tpu_custom_call.1} parent=1 // pred_fallthru
      _
    // Predicated region
    $region58: #{tpu_custom_call.1} parent=1 // pred_check
      _
    $region59: #{tpu_custom_call.1} parent=1 // pred_check_branch
      %1675 = sbr.rel (0) target = $region61
    $region60: #{tpu_custom_call.1} parent=1 // pred_region
      %1676 = dma.done [#allocation4], 128
    $region61: #{tpu_custom_call.1} parent=1 // pred_fallthru
      _
    %1677 = vsyncpa [#allocation3], 1
    %1678 = vsyncpa [#allocation6], 1
    %1679 = vsyncpa [#allocation9], 1
    %1680 = vsyncpa [#allocation4], 1

</llo_original>
